<compile_context>
chip_gen: v7x
topology: tpu7x:2x2x1
jax: 0.10.0
libtpu: 0.0.40
codegen_flags: <defaults>
</compile_context>

<pallas_src>
import functools

import jax
import jax.numpy as jnp
from jax import lax
from jax.experimental import pallas as pl
from jax.experimental.pallas import tpu as pltpu


# ----------------------------------------------------------------------------
# Fused Pallas kernel: all LSTM layers + decoder MLP in one body.
# ----------------------------------------------------------------------------
def fused_lstm_mlp_kernel(*refs, num_layers, n_mlp, T, B, H):
    """refs = [x2d, (wih, whh, b) * num_layers, (w, b) * n_mlp, out]

    x2d  : (T*B, I)  time-major flattened, batch-padded input
    wih  : (I_l, 4H) W_ih^T, gate columns permuted to (i, f, o, g)
    whh  : (H, 4H)   W_hh^T, same gate permutation
    b    : (1, 4H)   b_ih + b_hh, same gate permutation
    w, b : decoder dense weights (D_in, D_out), (1, D_out)
    out  : (B, output_size)
    """
    x_ref = refs[0]
    pos = 1
    lstm_refs = []
    for _ in range(num_layers):
        lstm_refs.append(refs[pos:pos + 3])
        pos += 3
    mlp_refs = []
    for _ in range(n_mlp):
        mlp_refs.append(refs[pos:pos + 2])
        pos += 2
    out_ref = refs[pos]

    # MXU operands in bf16 (native on v5e/v6e/v7x); accumulation in f32.
    layer_in = x_ref[...].astype(jnp.bfloat16)          # (T*B, I_0)

    h = None
    for l, (wih_ref, whh_ref, b_ref) in enumerate(lstm_refs):
        wih = wih_ref[...].astype(jnp.bfloat16)          # (I_l, 4H)
        whh = whh_ref[...].astype(jnp.bfloat16)          # (H, 4H)
        bias = b_ref[...]                                # (1, 4H) f32

        # Input projection for every timestep at once: one (T*B, I) @ (I, 4H)
        # matmul, off the serial recurrence path.
        x_proj = (
            jnp.dot(layer_in, wih, preferred_element_type=jnp.float32) + bias
        )                                                # (T*B, 4H) f32

        h = jnp.zeros((B, H), jnp.float32)               # init_memory=True -> zeros
        c = jnp.zeros((B, H), jnp.float32)
        is_last_layer = (l == num_layers - 1)
        h_seq = []

        # T is small and static -> fully unrolled serial recurrence.
        # TODO(synk): could hold W_hh resident via pltpu.matmul_push_rhs/acc/pop;
        # kept as plain jnp.dot for robustness.
        for t in range(T):
            # B is padded to a multiple of 8 -> this slice is sublane-aligned.
            g = x_proj[t * B:(t + 1) * B, :] + jnp.dot(
                h.astype(jnp.bfloat16), whh,
                preferred_element_type=jnp.float32)      # (B, 4H) f32
            # Permuted gate order (i, f, o | g): one sigmoid + one tanh per step.
            s = jax.nn.sigmoid(g[:, 0:3 * H])
            i_g = s[:, 0 * H:1 * H]
            f_g = s[:, 1 * H:2 * H]
            o_g = s[:, 2 * H:3 * H]
            g_g = jnp.tanh(g[:, 3 * H:4 * H])
            c = f_g * c + i_g * g_g
            h = o_g * jnp.tanh(c)
            if not is_last_layer:
                h_seq.append(h)                          # stays vreg-resident

        if not is_last_layer:
            layer_in = jnp.concatenate(h_seq, axis=0).astype(jnp.bfloat16)

    # encoder_output == 'output': last-timestep hidden of top layer (= h here).
    # TODO(synk): dropout is a no-op at inference; training-mode dropout not implemented.
    z = h
    for m, (w_ref, bm_ref) in enumerate(mlp_refs):
        z = jnp.dot(z.astype(jnp.bfloat16), w_ref[...].astype(jnp.bfloat16),
                    preferred_element_type=jnp.float32) + bm_ref[...]
        if m < n_mlp - 1:
            z = jnp.maximum(z, 0.0)
    out_ref[...] = z.astype(out_ref.dtype)


# ----------------------------------------------------------------------------
# Wrapper
# ----------------------------------------------------------------------------
def lstm_forward(x_bti, lstm_params, mlp_params, hidden_size):
    """Equivalent to LSTM.forward(x, init_memory=True) with
    encoder_output='output' and dropout in eval mode."""
    B, T, I = x_bti.shape
    H = hidden_size
    # Pad batch to the f32 sublane count so per-timestep offsets are 8-aligned.
    Bp = max(8, ((B + 7) // 8) * 8)

    # batch_first -> time-major, zero-pad batch, flatten to 2-D.
    x_tm = jnp.transpose(x_bti, (1, 0, 2)).astype(jnp.float32)      # (T, B, I)
    if Bp != B:
        x_tm = jnp.pad(x_tm, ((0, 0), (0, Bp - B), (0, 0)))
    x2d = x_tm.reshape(T * Bp, I)

    # Permute gate columns once: PyTorch (i, f, g, o) -> kernel (i, f, o, g).
    def perm_gates(m):
        return jnp.concatenate(
            [m[..., 0:2 * H], m[..., 3 * H:4 * H], m[..., 2 * H:3 * H]], axis=-1)

    lstm_params_k = [(perm_gates(wih), perm_gates(whh), perm_gates(b))
                     for (wih, whh, b) in lstm_params]

    num_layers = len(lstm_params_k)
    n_mlp = len(mlp_params)
    out_dim = mlp_params[-1][0].shape[1]

    vmem_spec = pl.BlockSpec(memory_space=pltpu.MemorySpace.VMEM)

    args = [x2d]
    for (wih, whh, b) in lstm_params_k:
        args += [wih, whh, b]
    for (w, b) in mlp_params:
        args += [w, b]
    in_specs = [vmem_spec] * len(args)

    kernel = functools.partial(
        fused_lstm_mlp_kernel,
        num_layers=num_layers, n_mlp=n_mlp, T=T, B=Bp, H=hidden_size)

    out = pl.pallas_call(
        kernel,
        out_shape=jax.ShapeDtypeStruct((Bp, out_dim), jnp.float32),
        in_specs=in_specs,
        out_specs=vmem_spec,
    )(*args)
    return out[:B]


# ----------------------------------------------------------------------------
# Pure-JAX reference (for correctness check; f32, original PyTorch gate order)
# ----------------------------------------------------------------------------
def lstm_forward_ref(x_bti, lstm_params, mlp_params, hidden_size):
    x = jnp.transpose(x_bti, (1, 0, 2)).astype(jnp.float32)
    B = x.shape[1]
    for (w_ih_t, w_hh_t, bias) in lstm_params:
        def step(carry, x_t):
            h, c = carry
            g = x_t @ w_ih_t + h @ w_hh_t + bias[0]
            H = hidden_size
            i = jax.nn.sigmoid(g[:, 0:H])
            f = jax.nn.sigmoid(g[:, H:2 * H])
            gg = jnp.tanh(g[:, 2 * H:3 * H])
            o = jax.nn.sigmoid(g[:, 3 * H:4 * H])
            c = f * c + i * gg
            h = o * jnp.tanh(c)
            return (h, c), h
        init = (jnp.zeros((B, hidden_size)), jnp.zeros((B, hidden_size)))
        _, x = lax.scan(step, init, x)
    h = x[-1]
    n = len(mlp_params)
    for idx, (w, b) in enumerate(mlp_params):
        h = h @ w + b[0]
        if idx < n - 1:
            h = jnp.maximum(h, 0.0)
    return h


# ----------------------------------------------------------------------------
# Deterministic parameter init (PyTorch-style uniform bounds)
# ----------------------------------------------------------------------------
def init_params(key, input_size, hidden_size, num_layers, decoder_sizes, output_size):
    lstm_params = []
    k_lstm = 1.0 / jnp.sqrt(hidden_size)
    for layer in range(num_layers):
        in_dim = input_size if layer == 0 else hidden_size
        key, k1, k2, k3, k4 = jax.random.split(key, 5)
        w_ih = jax.random.uniform(k1, (4 * hidden_size, in_dim), jnp.float32, -k_lstm, k_lstm)
        w_hh = jax.random.uniform(k2, (4 * hidden_size, hidden_size), jnp.float32, -k_lstm, k_lstm)
        b_ih = jax.random.uniform(k3, (4 * hidden_size,), jnp.float32, -k_lstm, k_lstm)
        b_hh = jax.random.uniform(k4, (4 * hidden_size,), jnp.float32, -k_lstm, k_lstm)
        lstm_params.append((w_ih.T, w_hh.T, (b_ih + b_hh)[None, :]))

    mlp_params = []
    dims = [hidden_size] + list(decoder_sizes) + [output_size]
    for d_in, d_out in zip(dims[:-1], dims[1:]):
        key, k1, k2 = jax.random.split(key, 3)
        k_lin = 1.0 / jnp.sqrt(d_in)
        w = jax.random.uniform(k1, (d_in, d_out), jnp.float32, -k_lin, k_lin)
        b = jax.random.uniform(k2, (1, d_out), jnp.float32, -k_lin, k_lin)
        mlp_params.append((w, b))
    return lstm_params, mlp_params


# ----------------------------------------------------------------------------
if __name__ == "__main__":
    # Module hyperparameters (small, consistent with the PyTorch ctor)
    input_size = 4
    encoder_sizes = [32]       # hidden_size = 32
    num_layers = 2
    history_len = 8            # sequence length
    decoder_sizes = [32, 16]
    output_size = 4
    hidden_size = encoder_sizes[0]

    key = jax.random.PRNGKey(0)
    key, kx = jax.random.split(key)
    batch = 2
    x = jax.random.normal(kx, (batch, history_len, input_size), jnp.float32)  # batch_first

    lstm_params, mlp_params = init_params(
        key, input_size, hidden_size, num_layers, decoder_sizes, output_size)

    out = lstm_forward(x, lstm_params, mlp_params, hidden_size)
    out = jax.block_until_ready(out)

    ref = lstm_forward_ref(x, lstm_params, mlp_params, hidden_size)
    assert out.shape == (batch, output_size)
    # Tolerance loosened because MXU operands are bf16 (f32 accumulation).
    assert jnp.allclose(out, ref, atol=5e-2, rtol=5e-2), "mismatch vs pure-JAX reference"

    print("KERNEL_OK")
</pallas_src>

<mosaic_0001>
module attributes {stable_mosaic.version = 11 : i64} {
  func.func @fused_lstm_mlp_kernel(%arg0: memref<64x4xf32, #tpu.memory_space<vmem>>, %arg1: memref<4x128xf32, #tpu.memory_space<vmem>>, %arg2: memref<32x128xf32, #tpu.memory_space<vmem>>, %arg3: memref<1x128xf32, #tpu.memory_space<vmem>>, %arg4: memref<32x128xf32, #tpu.memory_space<vmem>>, %arg5: memref<32x128xf32, #tpu.memory_space<vmem>>, %arg6: memref<1x128xf32, #tpu.memory_space<vmem>>, %arg7: memref<32x32xf32, #tpu.memory_space<vmem>>, %arg8: memref<1x32xf32, #tpu.memory_space<vmem>>, %arg9: memref<32x16xf32, #tpu.memory_space<vmem>>, %arg10: memref<1x16xf32, #tpu.memory_space<vmem>>, %arg11: memref<16x4xf32, #tpu.memory_space<vmem>>, %arg12: memref<1x4xf32, #tpu.memory_space<vmem>>, %arg13: memref<8x4xf32, #tpu.memory_space<vmem>>) attributes {dimension_semantics = [], scalar_prefetch = 0 : i64, scratch_operands = 0 : i64, tpu.core_type = #tpu.core_type<tc>} {
    %c0 = arith.constant 0 : index
    %c0_0 = arith.constant 0 : index
    %0 = vector.load %arg0[%c0, %c0_0] : memref<64x4xf32, #tpu.memory_space<vmem>>, vector<64x4xf32>
    %1 = arith.truncf %0 : vector<64x4xf32> to vector<64x4xbf16>
    %c0_1 = arith.constant 0 : index
    %c0_2 = arith.constant 0 : index
    %2 = vector.load %arg1[%c0_1, %c0_2] : memref<4x128xf32, #tpu.memory_space<vmem>>, vector<4x128xf32>
    %3 = arith.truncf %2 : vector<4x128xf32> to vector<4x128xbf16>
    %c0_3 = arith.constant 0 : index
    %c0_4 = arith.constant 0 : index
    %4 = vector.load %arg2[%c0_3, %c0_4] : memref<32x128xf32, #tpu.memory_space<vmem>>, vector<32x128xf32>
    %5 = arith.truncf %4 : vector<32x128xf32> to vector<32x128xbf16>
    %c0_5 = arith.constant 0 : index
    %c0_6 = arith.constant 0 : index
    %6 = vector.load %arg3[%c0_5, %c0_6] : memref<1x128xf32, #tpu.memory_space<vmem>>, vector<1x128xf32>
    %cst = arith.constant dense<0.000000e+00> : vector<64x128xf32>
    %7 = tpu.matmul %1, %3, %cst {dimension_numbers = #tpu.dot_dimension_numbers<[1], [0], [0], [1], [0, 0, 1, 1], [], []>} : vector<64x4xbf16>, vector<4x128xbf16>, vector<64x128xf32> -> vector<64x128xf32>
    %8 = vector.broadcast %6 : vector<1x128xf32> to vector<64x128xf32>
    %9 = arith.addf %7, %8 : vector<64x128xf32>
    %cst_7 = arith.constant 0.000000e+00 : f32
    %10 = vector.broadcast %cst_7 : f32 to vector<8x32xf32>
    %cst_8 = arith.constant 0.000000e+00 : f32
    %11 = vector.broadcast %cst_8 : f32 to vector<8x32xf32>
    %12 = vector.extract_strided_slice %9 {offsets = [0, 0], sizes = [8, 128], strides = [1, 1]} : vector<64x128xf32> to vector<8x128xf32>
    %13 = arith.truncf %10 : vector<8x32xf32> to vector<8x32xbf16>
    %cst_9 = arith.constant dense<0.000000e+00> : vector<8x128xf32>
    %14 = tpu.matmul %13, %5, %cst_9 {dimension_numbers = #tpu.dot_dimension_numbers<[1], [0], [0], [1], [0, 0, 1, 1], [], []>} : vector<8x32xbf16>, vector<32x128xbf16>, vector<8x128xf32> -> vector<8x128xf32>
    %15 = arith.addf %12, %14 : vector<8x128xf32>
    %16 = vector.extract_strided_slice %15 {offsets = [0, 0], sizes = [8, 96], strides = [1, 1]} : vector<8x128xf32> to vector<8x96xf32>
    %17 = arith.negf %16 : vector<8x96xf32>
    %18 = math.exp %17 : vector<8x96xf32>
    %cst_10 = arith.constant 1.000000e+00 : f32
    %19 = vector.broadcast %cst_10 : f32 to vector<8x96xf32>
    %20 = arith.addf %19, %18 : vector<8x96xf32>
    %21 = arith.divf %19, %20 : vector<8x96xf32>
    %22 = vector.extract_strided_slice %21 {offsets = [0, 0], sizes = [8, 32], strides = [1, 1]} : vector<8x96xf32> to vector<8x32xf32>
    %23 = vector.extract_strided_slice %21 {offsets = [0, 32], sizes = [8, 32], strides = [1, 1]} : vector<8x96xf32> to vector<8x32xf32>
    %24 = vector.extract_strided_slice %21 {offsets = [0, 64], sizes = [8, 32], strides = [1, 1]} : vector<8x96xf32> to vector<8x32xf32>
    %25 = vector.extract_strided_slice %15 {offsets = [0, 96], sizes = [8, 32], strides = [1, 1]} : vector<8x128xf32> to vector<8x32xf32>
    %26 = math.tanh %25 : vector<8x32xf32>
    %27 = arith.mulf %23, %11 : vector<8x32xf32>
    %28 = arith.mulf %22, %26 : vector<8x32xf32>
    %29 = arith.addf %27, %28 : vector<8x32xf32>
    %30 = math.tanh %29 : vector<8x32xf32>
    %31 = arith.mulf %24, %30 : vector<8x32xf32>
    %32 = vector.extract_strided_slice %9 {offsets = [8, 0], sizes = [8, 128], strides = [1, 1]} : vector<64x128xf32> to vector<8x128xf32>
    %33 = arith.truncf %31 : vector<8x32xf32> to vector<8x32xbf16>
    %cst_11 = arith.constant dense<0.000000e+00> : vector<8x128xf32>
    %34 = tpu.matmul %33, %5, %cst_11 {dimension_numbers = #tpu.dot_dimension_numbers<[1], [0], [0], [1], [0, 0, 1, 1], [], []>} : vector<8x32xbf16>, vector<32x128xbf16>, vector<8x128xf32> -> vector<8x128xf32>
    %35 = arith.addf %32, %34 : vector<8x128xf32>
    %36 = vector.extract_strided_slice %35 {offsets = [0, 0], sizes = [8, 96], strides = [1, 1]} : vector<8x128xf32> to vector<8x96xf32>
    %37 = arith.negf %36 : vector<8x96xf32>
    %38 = math.exp %37 : vector<8x96xf32>
    %cst_12 = arith.constant 1.000000e+00 : f32
    %39 = vector.broadcast %cst_12 : f32 to vector<8x96xf32>
    %40 = arith.addf %39, %38 : vector<8x96xf32>
    %41 = arith.divf %39, %40 : vector<8x96xf32>
    %42 = vector.extract_strided_slice %41 {offsets = [0, 0], sizes = [8, 32], strides = [1, 1]} : vector<8x96xf32> to vector<8x32xf32>
    %43 = vector.extract_strided_slice %41 {offsets = [0, 32], sizes = [8, 32], strides = [1, 1]} : vector<8x96xf32> to vector<8x32xf32>
    %44 = vector.extract_strided_slice %41 {offsets = [0, 64], sizes = [8, 32], strides = [1, 1]} : vector<8x96xf32> to vector<8x32xf32>
    %45 = vector.extract_strided_slice %35 {offsets = [0, 96], sizes = [8, 32], strides = [1, 1]} : vector<8x128xf32> to vector<8x32xf32>
    %46 = math.tanh %45 : vector<8x32xf32>
    %47 = arith.mulf %43, %29 : vector<8x32xf32>
    %48 = arith.mulf %42, %46 : vector<8x32xf32>
    %49 = arith.addf %47, %48 : vector<8x32xf32>
    %50 = math.tanh %49 : vector<8x32xf32>
    %51 = arith.mulf %44, %50 : vector<8x32xf32>
    %52 = vector.extract_strided_slice %9 {offsets = [16, 0], sizes = [8, 128], strides = [1, 1]} : vector<64x128xf32> to vector<8x128xf32>
    %53 = arith.truncf %51 : vector<8x32xf32> to vector<8x32xbf16>
    %cst_13 = arith.constant dense<0.000000e+00> : vector<8x128xf32>
    %54 = tpu.matmul %53, %5, %cst_13 {dimension_numbers = #tpu.dot_dimension_numbers<[1], [0], [0], [1], [0, 0, 1, 1], [], []>} : vector<8x32xbf16>, vector<32x128xbf16>, vector<8x128xf32> -> vector<8x128xf32>
    %55 = arith.addf %52, %54 : vector<8x128xf32>
    %56 = vector.extract_strided_slice %55 {offsets = [0, 0], sizes = [8, 96], strides = [1, 1]} : vector<8x128xf32> to vector<8x96xf32>
    %57 = arith.negf %56 : vector<8x96xf32>
    %58 = math.exp %57 : vector<8x96xf32>
    %cst_14 = arith.constant 1.000000e+00 : f32
    %59 = vector.broadcast %cst_14 : f32 to vector<8x96xf32>
    %60 = arith.addf %59, %58 : vector<8x96xf32>
    %61 = arith.divf %59, %60 : vector<8x96xf32>
    %62 = vector.extract_strided_slice %61 {offsets = [0, 0], sizes = [8, 32], strides = [1, 1]} : vector<8x96xf32> to vector<8x32xf32>
    %63 = vector.extract_strided_slice %61 {offsets = [0, 32], sizes = [8, 32], strides = [1, 1]} : vector<8x96xf32> to vector<8x32xf32>
    %64 = vector.extract_strided_slice %61 {offsets = [0, 64], sizes = [8, 32], strides = [1, 1]} : vector<8x96xf32> to vector<8x32xf32>
    %65 = vector.extract_strided_slice %55 {offsets = [0, 96], sizes = [8, 32], strides = [1, 1]} : vector<8x128xf32> to vector<8x32xf32>
    %66 = math.tanh %65 : vector<8x32xf32>
    %67 = arith.mulf %63, %49 : vector<8x32xf32>
    %68 = arith.mulf %62, %66 : vector<8x32xf32>
    %69 = arith.addf %67, %68 : vector<8x32xf32>
    %70 = math.tanh %69 : vector<8x32xf32>
    %71 = arith.mulf %64, %70 : vector<8x32xf32>
    %72 = vector.extract_strided_slice %9 {offsets = [24, 0], sizes = [8, 128], strides = [1, 1]} : vector<64x128xf32> to vector<8x128xf32>
    %73 = arith.truncf %71 : vector<8x32xf32> to vector<8x32xbf16>
    %cst_15 = arith.constant dense<0.000000e+00> : vector<8x128xf32>
    %74 = tpu.matmul %73, %5, %cst_15 {dimension_numbers = #tpu.dot_dimension_numbers<[1], [0], [0], [1], [0, 0, 1, 1], [], []>} : vector<8x32xbf16>, vector<32x128xbf16>, vector<8x128xf32> -> vector<8x128xf32>
    %75 = arith.addf %72, %74 : vector<8x128xf32>
    %76 = vector.extract_strided_slice %75 {offsets = [0, 0], sizes = [8, 96], strides = [1, 1]} : vector<8x128xf32> to vector<8x96xf32>
    %77 = arith.negf %76 : vector<8x96xf32>
    %78 = math.exp %77 : vector<8x96xf32>
    %cst_16 = arith.constant 1.000000e+00 : f32
    %79 = vector.broadcast %cst_16 : f32 to vector<8x96xf32>
    %80 = arith.addf %79, %78 : vector<8x96xf32>
    %81 = arith.divf %79, %80 : vector<8x96xf32>
    %82 = vector.extract_strided_slice %81 {offsets = [0, 0], sizes = [8, 32], strides = [1, 1]} : vector<8x96xf32> to vector<8x32xf32>
    %83 = vector.extract_strided_slice %81 {offsets = [0, 32], sizes = [8, 32], strides = [1, 1]} : vector<8x96xf32> to vector<8x32xf32>
    %84 = vector.extract_strided_slice %81 {offsets = [0, 64], sizes = [8, 32], strides = [1, 1]} : vector<8x96xf32> to vector<8x32xf32>
    %85 = vector.extract_strided_slice %75 {offsets = [0, 96], sizes = [8, 32], strides = [1, 1]} : vector<8x128xf32> to vector<8x32xf32>
    %86 = math.tanh %85 : vector<8x32xf32>
    %87 = arith.mulf %83, %69 : vector<8x32xf32>
    %88 = arith.mulf %82, %86 : vector<8x32xf32>
    %89 = arith.addf %87, %88 : vector<8x32xf32>
    %90 = math.tanh %89 : vector<8x32xf32>
    %91 = arith.mulf %84, %90 : vector<8x32xf32>
    %92 = vector.extract_strided_slice %9 {offsets = [32, 0], sizes = [8, 128], strides = [1, 1]} : vector<64x128xf32> to vector<8x128xf32>
    %93 = arith.truncf %91 : vector<8x32xf32> to vector<8x32xbf16>
    %cst_17 = arith.constant dense<0.000000e+00> : vector<8x128xf32>
    %94 = tpu.matmul %93, %5, %cst_17 {dimension_numbers = #tpu.dot_dimension_numbers<[1], [0], [0], [1], [0, 0, 1, 1], [], []>} : vector<8x32xbf16>, vector<32x128xbf16>, vector<8x128xf32> -> vector<8x128xf32>
    %95 = arith.addf %92, %94 : vector<8x128xf32>
    %96 = vector.extract_strided_slice %95 {offsets = [0, 0], sizes = [8, 96], strides = [1, 1]} : vector<8x128xf32> to vector<8x96xf32>
    %97 = arith.negf %96 : vector<8x96xf32>
    %98 = math.exp %97 : vector<8x96xf32>
    %cst_18 = arith.constant 1.000000e+00 : f32
    %99 = vector.broadcast %cst_18 : f32 to vector<8x96xf32>
    %100 = arith.addf %99, %98 : vector<8x96xf32>
    %101 = arith.divf %99, %100 : vector<8x96xf32>
    %102 = vector.extract_strided_slice %101 {offsets = [0, 0], sizes = [8, 32], strides = [1, 1]} : vector<8x96xf32> to vector<8x32xf32>
    %103 = vector.extract_strided_slice %101 {offsets = [0, 32], sizes = [8, 32], strides = [1, 1]} : vector<8x96xf32> to vector<8x32xf32>
    %104 = vector.extract_strided_slice %101 {offsets = [0, 64], sizes = [8, 32], strides = [1, 1]} : vector<8x96xf32> to vector<8x32xf32>
    %105 = vector.extract_strided_slice %95 {offsets = [0, 96], sizes = [8, 32], strides = [1, 1]} : vector<8x128xf32> to vector<8x32xf32>
    %106 = math.tanh %105 : vector<8x32xf32>
    %107 = arith.mulf %103, %89 : vector<8x32xf32>
    %108 = arith.mulf %102, %106 : vector<8x32xf32>
    %109 = arith.addf %107, %108 : vector<8x32xf32>
    %110 = math.tanh %109 : vector<8x32xf32>
    %111 = arith.mulf %104, %110 : vector<8x32xf32>
    %112 = vector.extract_strided_slice %9 {offsets = [40, 0], sizes = [8, 128], strides = [1, 1]} : vector<64x128xf32> to vector<8x128xf32>
    %113 = arith.truncf %111 : vector<8x32xf32> to vector<8x32xbf16>
    %cst_19 = arith.constant dense<0.000000e+00> : vector<8x128xf32>
    %114 = tpu.matmul %113, %5, %cst_19 {dimension_numbers = #tpu.dot_dimension_numbers<[1], [0], [0], [1], [0, 0, 1, 1], [], []>} : vector<8x32xbf16>, vector<32x128xbf16>, vector<8x128xf32> -> vector<8x128xf32>
    %115 = arith.addf %112, %114 : vector<8x128xf32>
    %116 = vector.extract_strided_slice %115 {offsets = [0, 0], sizes = [8, 96], strides = [1, 1]} : vector<8x128xf32> to vector<8x96xf32>
    %117 = arith.negf %116 : vector<8x96xf32>
    %118 = math.exp %117 : vector<8x96xf32>
    %cst_20 = arith.constant 1.000000e+00 : f32
    %119 = vector.broadcast %cst_20 : f32 to vector<8x96xf32>
    %120 = arith.addf %119, %118 : vector<8x96xf32>
    %121 = arith.divf %119, %120 : vector<8x96xf32>
    %122 = vector.extract_strided_slice %121 {offsets = [0, 0], sizes = [8, 32], strides = [1, 1]} : vector<8x96xf32> to vector<8x32xf32>
    %123 = vector.extract_strided_slice %121 {offsets = [0, 32], sizes = [8, 32], strides = [1, 1]} : vector<8x96xf32> to vector<8x32xf32>
    %124 = vector.extract_strided_slice %121 {offsets = [0, 64], sizes = [8, 32], strides = [1, 1]} : vector<8x96xf32> to vector<8x32xf32>
    %125 = vector.extract_strided_slice %115 {offsets = [0, 96], sizes = [8, 32], strides = [1, 1]} : vector<8x128xf32> to vector<8x32xf32>
    %126 = math.tanh %125 : vector<8x32xf32>
    %127 = arith.mulf %123, %109 : vector<8x32xf32>
    %128 = arith.mulf %122, %126 : vector<8x32xf32>
    %129 = arith.addf %127, %128 : vector<8x32xf32>
    %130 = math.tanh %129 : vector<8x32xf32>
    %131 = arith.mulf %124, %130 : vector<8x32xf32>
    %132 = vector.extract_strided_slice %9 {offsets = [48, 0], sizes = [8, 128], strides = [1, 1]} : vector<64x128xf32> to vector<8x128xf32>
    %133 = arith.truncf %131 : vector<8x32xf32> to vector<8x32xbf16>
    %cst_21 = arith.constant dense<0.000000e+00> : vector<8x128xf32>
    %134 = tpu.matmul %133, %5, %cst_21 {dimension_numbers = #tpu.dot_dimension_numbers<[1], [0], [0], [1], [0, 0, 1, 1], [], []>} : vector<8x32xbf16>, vector<32x128xbf16>, vector<8x128xf32> -> vector<8x128xf32>
    %135 = arith.addf %132, %134 : vector<8x128xf32>
    %136 = vector.extract_strided_slice %135 {offsets = [0, 0], sizes = [8, 96], strides = [1, 1]} : vector<8x128xf32> to vector<8x96xf32>
    %137 = arith.negf %136 : vector<8x96xf32>
    %138 = math.exp %137 : vector<8x96xf32>
    %cst_22 = arith.constant 1.000000e+00 : f32
    %139 = vector.broadcast %cst_22 : f32 to vector<8x96xf32>
    %140 = arith.addf %139, %138 : vector<8x96xf32>
    %141 = arith.divf %139, %140 : vector<8x96xf32>
    %142 = vector.extract_strided_slice %141 {offsets = [0, 0], sizes = [8, 32], strides = [1, 1]} : vector<8x96xf32> to vector<8x32xf32>
    %143 = vector.extract_strided_slice %141 {offsets = [0, 32], sizes = [8, 32], strides = [1, 1]} : vector<8x96xf32> to vector<8x32xf32>
    %144 = vector.extract_strided_slice %141 {offsets = [0, 64], sizes = [8, 32], strides = [1, 1]} : vector<8x96xf32> to vector<8x32xf32>
    %145 = vector.extract_strided_slice %135 {offsets = [0, 96], sizes = [8, 32], strides = [1, 1]} : vector<8x128xf32> to vector<8x32xf32>
    %146 = math.tanh %145 : vector<8x32xf32>
    %147 = arith.mulf %143, %129 : vector<8x32xf32>
    %148 = arith.mulf %142, %146 : vector<8x32xf32>
    %149 = arith.addf %147, %148 : vector<8x32xf32>
    %150 = math.tanh %149 : vector<8x32xf32>
    %151 = arith.mulf %144, %150 : vector<8x32xf32>
    %152 = vector.extract_strided_slice %9 {offsets = [56, 0], sizes = [8, 128], strides = [1, 1]} : vector<64x128xf32> to vector<8x128xf32>
    %153 = arith.truncf %151 : vector<8x32xf32> to vector<8x32xbf16>
    %cst_23 = arith.constant dense<0.000000e+00> : vector<8x128xf32>
    %154 = tpu.matmul %153, %5, %cst_23 {dimension_numbers = #tpu.dot_dimension_numbers<[1], [0], [0], [1], [0, 0, 1, 1], [], []>} : vector<8x32xbf16>, vector<32x128xbf16>, vector<8x128xf32> -> vector<8x128xf32>
    %155 = arith.addf %152, %154 : vector<8x128xf32>
    %156 = vector.extract_strided_slice %155 {offsets = [0, 0], sizes = [8, 96], strides = [1, 1]} : vector<8x128xf32> to vector<8x96xf32>
    %157 = arith.negf %156 : vector<8x96xf32>
    %158 = math.exp %157 : vector<8x96xf32>
    %cst_24 = arith.constant 1.000000e+00 : f32
    %159 = vector.broadcast %cst_24 : f32 to vector<8x96xf32>
    %160 = arith.addf %159, %158 : vector<8x96xf32>
    %161 = arith.divf %159, %160 : vector<8x96xf32>
    %162 = vector.extract_strided_slice %161 {offsets = [0, 0], sizes = [8, 32], strides = [1, 1]} : vector<8x96xf32> to vector<8x32xf32>
    %163 = vector.extract_strided_slice %161 {offsets = [0, 32], sizes = [8, 32], strides = [1, 1]} : vector<8x96xf32> to vector<8x32xf32>
    %164 = vector.extract_strided_slice %161 {offsets = [0, 64], sizes = [8, 32], strides = [1, 1]} : vector<8x96xf32> to vector<8x32xf32>
    %165 = vector.extract_strided_slice %155 {offsets = [0, 96], sizes = [8, 32], strides = [1, 1]} : vector<8x128xf32> to vector<8x32xf32>
    %166 = math.tanh %165 : vector<8x32xf32>
    %167 = arith.mulf %163, %149 : vector<8x32xf32>
    %168 = arith.mulf %162, %166 : vector<8x32xf32>
    %169 = arith.addf %167, %168 : vector<8x32xf32>
    %170 = math.tanh %169 : vector<8x32xf32>
    %171 = arith.mulf %164, %170 : vector<8x32xf32>
    %172 = tpu.concatenate %31, %51, %71, %91, %111, %131, %151, %171 in 0 : vector<8x32xf32>, vector<8x32xf32>, vector<8x32xf32>, vector<8x32xf32>, vector<8x32xf32>, vector<8x32xf32>, vector<8x32xf32>, vector<8x32xf32> -> vector<64x32xf32>
    %173 = arith.truncf %172 : vector<64x32xf32> to vector<64x32xbf16>
    %c0_25 = arith.constant 0 : index
    %c0_26 = arith.constant 0 : index
    %174 = vector.load %arg4[%c0_25, %c0_26] : memref<32x128xf32, #tpu.memory_space<vmem>>, vector<32x128xf32>
    %175 = arith.truncf %174 : vector<32x128xf32> to vector<32x128xbf16>
    %c0_27 = arith.constant 0 : index
    %c0_28 = arith.constant 0 : index
    %176 = vector.load %arg5[%c0_27, %c0_28] : memref<32x128xf32, #tpu.memory_space<vmem>>, vector<32x128xf32>
    %177 = arith.truncf %176 : vector<32x128xf32> to vector<32x128xbf16>
    %c0_29 = arith.constant 0 : index
    %c0_30 = arith.constant 0 : index
    %178 = vector.load %arg6[%c0_29, %c0_30] : memref<1x128xf32, #tpu.memory_space<vmem>>, vector<1x128xf32>
    %cst_31 = arith.constant dense<0.000000e+00> : vector<64x128xf32>
    %179 = tpu.matmul %173, %175, %cst_31 {dimension_numbers = #tpu.dot_dimension_numbers<[1], [0], [0], [1], [0, 0, 1, 1], [], []>} : vector<64x32xbf16>, vector<32x128xbf16>, vector<64x128xf32> -> vector<64x128xf32>
    %180 = vector.broadcast %178 : vector<1x128xf32> to vector<64x128xf32>
    %181 = arith.addf %179, %180 : vector<64x128xf32>
    %cst_32 = arith.constant 0.000000e+00 : f32
    %182 = vector.broadcast %cst_32 : f32 to vector<8x32xf32>
    %cst_33 = arith.constant 0.000000e+00 : f32
    %183 = vector.broadcast %cst_33 : f32 to vector<8x32xf32>
    %184 = vector.extract_strided_slice %181 {offsets = [0, 0], sizes = [8, 128], strides = [1, 1]} : vector<64x128xf32> to vector<8x128xf32>
    %185 = arith.truncf %182 : vector<8x32xf32> to vector<8x32xbf16>
    %cst_34 = arith.constant dense<0.000000e+00> : vector<8x128xf32>
    %186 = tpu.matmul %185, %177, %cst_34 {dimension_numbers = #tpu.dot_dimension_numbers<[1], [0], [0], [1], [0, 0, 1, 1], [], []>} : vector<8x32xbf16>, vector<32x128xbf16>, vector<8x128xf32> -> vector<8x128xf32>
    %187 = arith.addf %184, %186 : vector<8x128xf32>
    %188 = vector.extract_strided_slice %187 {offsets = [0, 0], sizes = [8, 96], strides = [1, 1]} : vector<8x128xf32> to vector<8x96xf32>
    %189 = arith.negf %188 : vector<8x96xf32>
    %190 = math.exp %189 : vector<8x96xf32>
    %cst_35 = arith.constant 1.000000e+00 : f32
    %191 = vector.broadcast %cst_35 : f32 to vector<8x96xf32>
    %192 = arith.addf %191, %190 : vector<8x96xf32>
    %193 = arith.divf %191, %192 : vector<8x96xf32>
    %194 = vector.extract_strided_slice %193 {offsets = [0, 0], sizes = [8, 32], strides = [1, 1]} : vector<8x96xf32> to vector<8x32xf32>
    %195 = vector.extract_strided_slice %193 {offsets = [0, 32], sizes = [8, 32], strides = [1, 1]} : vector<8x96xf32> to vector<8x32xf32>
    %196 = vector.extract_strided_slice %193 {offsets = [0, 64], sizes = [8, 32], strides = [1, 1]} : vector<8x96xf32> to vector<8x32xf32>
    %197 = vector.extract_strided_slice %187 {offsets = [0, 96], sizes = [8, 32], strides = [1, 1]} : vector<8x128xf32> to vector<8x32xf32>
    %198 = math.tanh %197 : vector<8x32xf32>
    %199 = arith.mulf %195, %183 : vector<8x32xf32>
    %200 = arith.mulf %194, %198 : vector<8x32xf32>
    %201 = arith.addf %199, %200 : vector<8x32xf32>
    %202 = math.tanh %201 : vector<8x32xf32>
    %203 = arith.mulf %196, %202 : vector<8x32xf32>
    %204 = vector.extract_strided_slice %181 {offsets = [8, 0], sizes = [8, 128], strides = [1, 1]} : vector<64x128xf32> to vector<8x128xf32>
    %205 = arith.truncf %203 : vector<8x32xf32> to vector<8x32xbf16>
    %cst_36 = arith.constant dense<0.000000e+00> : vector<8x128xf32>
    %206 = tpu.matmul %205, %177, %cst_36 {dimension_numbers = #tpu.dot_dimension_numbers<[1], [0], [0], [1], [0, 0, 1, 1], [], []>} : vector<8x32xbf16>, vector<32x128xbf16>, vector<8x128xf32> -> vector<8x128xf32>
    %207 = arith.addf %204, %206 : vector<8x128xf32>
    %208 = vector.extract_strided_slice %207 {offsets = [0, 0], sizes = [8, 96], strides = [1, 1]} : vector<8x128xf32> to vector<8x96xf32>
    %209 = arith.negf %208 : vector<8x96xf32>
    %210 = math.exp %209 : vector<8x96xf32>
    %cst_37 = arith.constant 1.000000e+00 : f32
    %211 = vector.broadcast %cst_37 : f32 to vector<8x96xf32>
    %212 = arith.addf %211, %210 : vector<8x96xf32>
    %213 = arith.divf %211, %212 : vector<8x96xf32>
    %214 = vector.extract_strided_slice %213 {offsets = [0, 0], sizes = [8, 32], strides = [1, 1]} : vector<8x96xf32> to vector<8x32xf32>
    %215 = vector.extract_strided_slice %213 {offsets = [0, 32], sizes = [8, 32], strides = [1, 1]} : vector<8x96xf32> to vector<8x32xf32>
    %216 = vector.extract_strided_slice %213 {offsets = [0, 64], sizes = [8, 32], strides = [1, 1]} : vector<8x96xf32> to vector<8x32xf32>
    %217 = vector.extract_strided_slice %207 {offsets = [0, 96], sizes = [8, 32], strides = [1, 1]} : vector<8x128xf32> to vector<8x32xf32>
    %218 = math.tanh %217 : vector<8x32xf32>
    %219 = arith.mulf %215, %201 : vector<8x32xf32>
    %220 = arith.mulf %214, %218 : vector<8x32xf32>
    %221 = arith.addf %219, %220 : vector<8x32xf32>
    %222 = math.tanh %221 : vector<8x32xf32>
    %223 = arith.mulf %216, %222 : vector<8x32xf32>
    %224 = vector.extract_strided_slice %181 {offsets = [16, 0], sizes = [8, 128], strides = [1, 1]} : vector<64x128xf32> to vector<8x128xf32>
    %225 = arith.truncf %223 : vector<8x32xf32> to vector<8x32xbf16>
    %cst_38 = arith.constant dense<0.000000e+00> : vector<8x128xf32>
    %226 = tpu.matmul %225, %177, %cst_38 {dimension_numbers = #tpu.dot_dimension_numbers<[1], [0], [0], [1], [0, 0, 1, 1], [], []>} : vector<8x32xbf16>, vector<32x128xbf16>, vector<8x128xf32> -> vector<8x128xf32>
    %227 = arith.addf %224, %226 : vector<8x128xf32>
    %228 = vector.extract_strided_slice %227 {offsets = [0, 0], sizes = [8, 96], strides = [1, 1]} : vector<8x128xf32> to vector<8x96xf32>
    %229 = arith.negf %228 : vector<8x96xf32>
    %230 = math.exp %229 : vector<8x96xf32>
    %cst_39 = arith.constant 1.000000e+00 : f32
    %231 = vector.broadcast %cst_39 : f32 to vector<8x96xf32>
    %232 = arith.addf %231, %230 : vector<8x96xf32>
    %233 = arith.divf %231, %232 : vector<8x96xf32>
    %234 = vector.extract_strided_slice %233 {offsets = [0, 0], sizes = [8, 32], strides = [1, 1]} : vector<8x96xf32> to vector<8x32xf32>
    %235 = vector.extract_strided_slice %233 {offsets = [0, 32], sizes = [8, 32], strides = [1, 1]} : vector<8x96xf32> to vector<8x32xf32>
    %236 = vector.extract_strided_slice %233 {offsets = [0, 64], sizes = [8, 32], strides = [1, 1]} : vector<8x96xf32> to vector<8x32xf32>
    %237 = vector.extract_strided_slice %227 {offsets = [0, 96], sizes = [8, 32], strides = [1, 1]} : vector<8x128xf32> to vector<8x32xf32>
    %238 = math.tanh %237 : vector<8x32xf32>
    %239 = arith.mulf %235, %221 : vector<8x32xf32>
    %240 = arith.mulf %234, %238 : vector<8x32xf32>
    %241 = arith.addf %239, %240 : vector<8x32xf32>
    %242 = math.tanh %241 : vector<8x32xf32>
    %243 = arith.mulf %236, %242 : vector<8x32xf32>
    %244 = vector.extract_strided_slice %181 {offsets = [24, 0], sizes = [8, 128], strides = [1, 1]} : vector<64x128xf32> to vector<8x128xf32>
    %245 = arith.truncf %243 : vector<8x32xf32> to vector<8x32xbf16>
    %cst_40 = arith.constant dense<0.000000e+00> : vector<8x128xf32>
    %246 = tpu.matmul %245, %177, %cst_40 {dimension_numbers = #tpu.dot_dimension_numbers<[1], [0], [0], [1], [0, 0, 1, 1], [], []>} : vector<8x32xbf16>, vector<32x128xbf16>, vector<8x128xf32> -> vector<8x128xf32>
    %247 = arith.addf %244, %246 : vector<8x128xf32>
    %248 = vector.extract_strided_slice %247 {offsets = [0, 0], sizes = [8, 96], strides = [1, 1]} : vector<8x128xf32> to vector<8x96xf32>
    %249 = arith.negf %248 : vector<8x96xf32>
    %250 = math.exp %249 : vector<8x96xf32>
    %cst_41 = arith.constant 1.000000e+00 : f32
    %251 = vector.broadcast %cst_41 : f32 to vector<8x96xf32>
    %252 = arith.addf %251, %250 : vector<8x96xf32>
    %253 = arith.divf %251, %252 : vector<8x96xf32>
    %254 = vector.extract_strided_slice %253 {offsets = [0, 0], sizes = [8, 32], strides = [1, 1]} : vector<8x96xf32> to vector<8x32xf32>
    %255 = vector.extract_strided_slice %253 {offsets = [0, 32], sizes = [8, 32], strides = [1, 1]} : vector<8x96xf32> to vector<8x32xf32>
    %256 = vector.extract_strided_slice %253 {offsets = [0, 64], sizes = [8, 32], strides = [1, 1]} : vector<8x96xf32> to vector<8x32xf32>
    %257 = vector.extract_strided_slice %247 {offsets = [0, 96], sizes = [8, 32], strides = [1, 1]} : vector<8x128xf32> to vector<8x32xf32>
    %258 = math.tanh %257 : vector<8x32xf32>
    %259 = arith.mulf %255, %241 : vector<8x32xf32>
    %260 = arith.mulf %254, %258 : vector<8x32xf32>
    %261 = arith.addf %259, %260 : vector<8x32xf32>
    %262 = math.tanh %261 : vector<8x32xf32>
    %263 = arith.mulf %256, %262 : vector<8x32xf32>
    %264 = vector.extract_strided_slice %181 {offsets = [32, 0], sizes = [8, 128], strides = [1, 1]} : vector<64x128xf32> to vector<8x128xf32>
    %265 = arith.truncf %263 : vector<8x32xf32> to vector<8x32xbf16>
    %cst_42 = arith.constant dense<0.000000e+00> : vector<8x128xf32>
    %266 = tpu.matmul %265, %177, %cst_42 {dimension_numbers = #tpu.dot_dimension_numbers<[1], [0], [0], [1], [0, 0, 1, 1], [], []>} : vector<8x32xbf16>, vector<32x128xbf16>, vector<8x128xf32> -> vector<8x128xf32>
    %267 = arith.addf %264, %266 : vector<8x128xf32>
    %268 = vector.extract_strided_slice %267 {offsets = [0, 0], sizes = [8, 96], strides = [1, 1]} : vector<8x128xf32> to vector<8x96xf32>
    %269 = arith.negf %268 : vector<8x96xf32>
    %270 = math.exp %269 : vector<8x96xf32>
    %cst_43 = arith.constant 1.000000e+00 : f32
    %271 = vector.broadcast %cst_43 : f32 to vector<8x96xf32>
    %272 = arith.addf %271, %270 : vector<8x96xf32>
    %273 = arith.divf %271, %272 : vector<8x96xf32>
    %274 = vector.extract_strided_slice %273 {offsets = [0, 0], sizes = [8, 32], strides = [1, 1]} : vector<8x96xf32> to vector<8x32xf32>
    %275 = vector.extract_strided_slice %273 {offsets = [0, 32], sizes = [8, 32], strides = [1, 1]} : vector<8x96xf32> to vector<8x32xf32>
    %276 = vector.extract_strided_slice %273 {offsets = [0, 64], sizes = [8, 32], strides = [1, 1]} : vector<8x96xf32> to vector<8x32xf32>
    %277 = vector.extract_strided_slice %267 {offsets = [0, 96], sizes = [8, 32], strides = [1, 1]} : vector<8x128xf32> to vector<8x32xf32>
    %278 = math.tanh %277 : vector<8x32xf32>
    %279 = arith.mulf %275, %261 : vector<8x32xf32>
    %280 = arith.mulf %274, %278 : vector<8x32xf32>
    %281 = arith.addf %279, %280 : vector<8x32xf32>
    %282 = math.tanh %281 : vector<8x32xf32>
    %283 = arith.mulf %276, %282 : vector<8x32xf32>
    %284 = vector.extract_strided_slice %181 {offsets = [40, 0], sizes = [8, 128], strides = [1, 1]} : vector<64x128xf32> to vector<8x128xf32>
    %285 = arith.truncf %283 : vector<8x32xf32> to vector<8x32xbf16>
    %cst_44 = arith.constant dense<0.000000e+00> : vector<8x128xf32>
    %286 = tpu.matmul %285, %177, %cst_44 {dimension_numbers = #tpu.dot_dimension_numbers<[1], [0], [0], [1], [0, 0, 1, 1], [], []>} : vector<8x32xbf16>, vector<32x128xbf16>, vector<8x128xf32> -> vector<8x128xf32>
    %287 = arith.addf %284, %286 : vector<8x128xf32>
    %288 = vector.extract_strided_slice %287 {offsets = [0, 0], sizes = [8, 96], strides = [1, 1]} : vector<8x128xf32> to vector<8x96xf32>
    %289 = arith.negf %288 : vector<8x96xf32>
    %290 = math.exp %289 : vector<8x96xf32>
    %cst_45 = arith.constant 1.000000e+00 : f32
    %291 = vector.broadcast %cst_45 : f32 to vector<8x96xf32>
    %292 = arith.addf %291, %290 : vector<8x96xf32>
    %293 = arith.divf %291, %292 : vector<8x96xf32>
    %294 = vector.extract_strided_slice %293 {offsets = [0, 0], sizes = [8, 32], strides = [1, 1]} : vector<8x96xf32> to vector<8x32xf32>
    %295 = vector.extract_strided_slice %293 {offsets = [0, 32], sizes = [8, 32], strides = [1, 1]} : vector<8x96xf32> to vector<8x32xf32>
    %296 = vector.extract_strided_slice %293 {offsets = [0, 64], sizes = [8, 32], strides = [1, 1]} : vector<8x96xf32> to vector<8x32xf32>
    %297 = vector.extract_strided_slice %287 {offsets = [0, 96], sizes = [8, 32], strides = [1, 1]} : vector<8x128xf32> to vector<8x32xf32>
    %298 = math.tanh %297 : vector<8x32xf32>
    %299 = arith.mulf %295, %281 : vector<8x32xf32>
    %300 = arith.mulf %294, %298 : vector<8x32xf32>
    %301 = arith.addf %299, %300 : vector<8x32xf32>
    %302 = math.tanh %301 : vector<8x32xf32>
    %303 = arith.mulf %296, %302 : vector<8x32xf32>
    %304 = vector.extract_strided_slice %181 {offsets = [48, 0], sizes = [8, 128], strides = [1, 1]} : vector<64x128xf32> to vector<8x128xf32>
    %305 = arith.truncf %303 : vector<8x32xf32> to vector<8x32xbf16>
    %cst_46 = arith.constant dense<0.000000e+00> : vector<8x128xf32>
    %306 = tpu.matmul %305, %177, %cst_46 {dimension_numbers = #tpu.dot_dimension_numbers<[1], [0], [0], [1], [0, 0, 1, 1], [], []>} : vector<8x32xbf16>, vector<32x128xbf16>, vector<8x128xf32> -> vector<8x128xf32>
    %307 = arith.addf %304, %306 : vector<8x128xf32>
    %308 = vector.extract_strided_slice %307 {offsets = [0, 0], sizes = [8, 96], strides = [1, 1]} : vector<8x128xf32> to vector<8x96xf32>
    %309 = arith.negf %308 : vector<8x96xf32>
    %310 = math.exp %309 : vector<8x96xf32>
    %cst_47 = arith.constant 1.000000e+00 : f32
    %311 = vector.broadcast %cst_47 : f32 to vector<8x96xf32>
    %312 = arith.addf %311, %310 : vector<8x96xf32>
    %313 = arith.divf %311, %312 : vector<8x96xf32>
    %314 = vector.extract_strided_slice %313 {offsets = [0, 0], sizes = [8, 32], strides = [1, 1]} : vector<8x96xf32> to vector<8x32xf32>
    %315 = vector.extract_strided_slice %313 {offsets = [0, 32], sizes = [8, 32], strides = [1, 1]} : vector<8x96xf32> to vector<8x32xf32>
    %316 = vector.extract_strided_slice %313 {offsets = [0, 64], sizes = [8, 32], strides = [1, 1]} : vector<8x96xf32> to vector<8x32xf32>
    %317 = vector.extract_strided_slice %307 {offsets = [0, 96], sizes = [8, 32], strides = [1, 1]} : vector<8x128xf32> to vector<8x32xf32>
    %318 = math.tanh %317 : vector<8x32xf32>
    %319 = arith.mulf %315, %301 : vector<8x32xf32>
    %320 = arith.mulf %314, %318 : vector<8x32xf32>
    %321 = arith.addf %319, %320 : vector<8x32xf32>
    %322 = math.tanh %321 : vector<8x32xf32>
    %323 = arith.mulf %316, %322 : vector<8x32xf32>
    %324 = vector.extract_strided_slice %181 {offsets = [56, 0], sizes = [8, 128], strides = [1, 1]} : vector<64x128xf32> to vector<8x128xf32>
    %325 = arith.truncf %323 : vector<8x32xf32> to vector<8x32xbf16>
    %cst_48 = arith.constant dense<0.000000e+00> : vector<8x128xf32>
    %326 = tpu.matmul %325, %177, %cst_48 {dimension_numbers = #tpu.dot_dimension_numbers<[1], [0], [0], [1], [0, 0, 1, 1], [], []>} : vector<8x32xbf16>, vector<32x128xbf16>, vector<8x128xf32> -> vector<8x128xf32>
    %327 = arith.addf %324, %326 : vector<8x128xf32>
    %328 = vector.extract_strided_slice %327 {offsets = [0, 0], sizes = [8, 96], strides = [1, 1]} : vector<8x128xf32> to vector<8x96xf32>
    %329 = arith.negf %328 : vector<8x96xf32>
    %330 = math.exp %329 : vector<8x96xf32>
    %cst_49 = arith.constant 1.000000e+00 : f32
    %331 = vector.broadcast %cst_49 : f32 to vector<8x96xf32>
    %332 = arith.addf %331, %330 : vector<8x96xf32>
    %333 = arith.divf %331, %332 : vector<8x96xf32>
    %334 = vector.extract_strided_slice %333 {offsets = [0, 0], sizes = [8, 32], strides = [1, 1]} : vector<8x96xf32> to vector<8x32xf32>
    %335 = vector.extract_strided_slice %333 {offsets = [0, 32], sizes = [8, 32], strides = [1, 1]} : vector<8x96xf32> to vector<8x32xf32>
    %336 = vector.extract_strided_slice %333 {offsets = [0, 64], sizes = [8, 32], strides = [1, 1]} : vector<8x96xf32> to vector<8x32xf32>
    %337 = vector.extract_strided_slice %327 {offsets = [0, 96], sizes = [8, 32], strides = [1, 1]} : vector<8x128xf32> to vector<8x32xf32>
    %338 = math.tanh %337 : vector<8x32xf32>
    %339 = arith.mulf %335, %321 : vector<8x32xf32>
    %340 = arith.mulf %334, %338 : vector<8x32xf32>
    %341 = arith.addf %339, %340 : vector<8x32xf32>
    %342 = math.tanh %341 : vector<8x32xf32>
    %343 = arith.mulf %336, %342 : vector<8x32xf32>
    %344 = arith.truncf %343 : vector<8x32xf32> to vector<8x32xbf16>
    %c0_50 = arith.constant 0 : index
    %c0_51 = arith.constant 0 : index
    %345 = vector.load %arg7[%c0_50, %c0_51] : memref<32x32xf32, #tpu.memory_space<vmem>>, vector<32x32xf32>
    %346 = arith.truncf %345 : vector<32x32xf32> to vector<32x32xbf16>
    %cst_52 = arith.constant dense<0.000000e+00> : vector<8x32xf32>
    %347 = tpu.matmul %344, %346, %cst_52 {dimension_numbers = #tpu.dot_dimension_numbers<[1], [0], [0], [1], [0, 0, 1, 1], [], []>} : vector<8x32xbf16>, vector<32x32xbf16>, vector<8x32xf32> -> vector<8x32xf32>
    %c0_53 = arith.constant 0 : index
    %c0_54 = arith.constant 0 : index
    %348 = vector.load %arg8[%c0_53, %c0_54] : memref<1x32xf32, #tpu.memory_space<vmem>>, vector<1x32xf32>
    %349 = vector.broadcast %348 : vector<1x32xf32> to vector<8x32xf32>
    %350 = arith.addf %347, %349 : vector<8x32xf32>
    %cst_55 = arith.constant 0.000000e+00 : f32
    %351 = vector.broadcast %cst_55 : f32 to vector<8x32xf32>
    %352 = arith.maximumf %350, %351 : vector<8x32xf32>
    %353 = arith.truncf %352 : vector<8x32xf32> to vector<8x32xbf16>
    %c0_56 = arith.constant 0 : index
    %c0_57 = arith.constant 0 : index
    %354 = vector.load %arg9[%c0_56, %c0_57] : memref<32x16xf32, #tpu.memory_space<vmem>>, vector<32x16xf32>
    %355 = arith.truncf %354 : vector<32x16xf32> to vector<32x16xbf16>
    %cst_58 = arith.constant dense<0.000000e+00> : vector<8x16xf32>
    %356 = tpu.matmul %353, %355, %cst_58 {dimension_numbers = #tpu.dot_dimension_numbers<[1], [0], [0], [1], [0, 0, 1, 1], [], []>} : vector<8x32xbf16>, vector<32x16xbf16>, vector<8x16xf32> -> vector<8x16xf32>
    %c0_59 = arith.constant 0 : index
    %c0_60 = arith.constant 0 : index
    %357 = vector.load %arg10[%c0_59, %c0_60] : memref<1x16xf32, #tpu.memory_space<vmem>>, vector<1x16xf32>
    %358 = vector.broadcast %357 : vector<1x16xf32> to vector<8x16xf32>
    %359 = arith.addf %356, %358 : vector<8x16xf32>
    %cst_61 = arith.constant 0.000000e+00 : f32
    %360 = vector.broadcast %cst_61 : f32 to vector<8x16xf32>
    %361 = arith.maximumf %359, %360 : vector<8x16xf32>
    %362 = arith.truncf %361 : vector<8x16xf32> to vector<8x16xbf16>
    %c0_62 = arith.constant 0 : index
    %c0_63 = arith.constant 0 : index
    %363 = vector.load %arg11[%c0_62, %c0_63] : memref<16x4xf32, #tpu.memory_space<vmem>>, vector<16x4xf32>
    %364 = arith.truncf %363 : vector<16x4xf32> to vector<16x4xbf16>
    %cst_64 = arith.constant dense<0.000000e+00> : vector<8x4xf32>
    %365 = tpu.matmul %362, %364, %cst_64 {dimension_numbers = #tpu.dot_dimension_numbers<[1], [0], [0], [1], [0, 0, 1, 1], [], []>} : vector<8x16xbf16>, vector<16x4xbf16>, vector<8x4xf32> -> vector<8x4xf32>
    %c0_65 = arith.constant 0 : index
    %c0_66 = arith.constant 0 : index
    %366 = vector.load %arg12[%c0_65, %c0_66] : memref<1x4xf32, #tpu.memory_space<vmem>>, vector<1x4xf32>
    %367 = vector.broadcast %366 : vector<1x4xf32> to vector<8x4xf32>
    %368 = arith.addf %365, %367 : vector<8x4xf32>
    %c0_67 = arith.constant 0 : index
    %c0_68 = arith.constant 0 : index
    %369 = vector.load %arg13[%c0_67, %c0_68] : memref<8x4xf32, #tpu.memory_space<vmem>>, vector<8x4xf32>
    tpu.vector_store %arg13[%c0_67, %c0_68], %368 {strides = array<i32>} : memref<8x4xf32, #tpu.memory_space<vmem>>, vector<8x4xf32>,
    return
  }
}

</mosaic_0001>

<llo_original>
// kernel: tpu_custom_call.1
$region0: #{tpu_custom_call.1}
  #allocation0 [shape = 'u32[]', space=smem, size = 0x4, offset = 0x4, fixed_abs, tag = 'smem constant byte address 0x4 - core index']
  #allocation1 [shape = 'u32[144,128]{1,0:T(1,128)}', space=vmem, size = 0x12000, scoped, tag = 'internal scratch']
  %s0 = inlined_call_operand.vmem [shape: f32[64,4], index: 0, kind: input, shape index: {}]
  %s1 = inlined_call_operand.hbm [shape: f32[4,128], index: 1, kind: input, shape index: {}]
  %s2 = inlined_call_operand.vmem [shape: f32[32,128], index: 2, kind: input, shape index: {}]
  %s3 = inlined_call_operand.vmem [shape: f32[1,128], index: 3, kind: input, shape index: {}]
  %s4 = inlined_call_operand.vmem [shape: f32[32,128], index: 4, kind: input, shape index: {}]
  %s5 = inlined_call_operand.vmem [shape: f32[32,128], index: 5, kind: input, shape index: {}]
  %s6 = inlined_call_operand.vmem [shape: f32[1,128], index: 6, kind: input, shape index: {}]
  %s7 = inlined_call_operand.vmem [shape: f32[32,32], index: 7, kind: input, shape index: {}]
  %s8 = inlined_call_operand.vmem [shape: f32[1,32], index: 8, kind: input, shape index: {}]
  %s9 = inlined_call_operand.vmem [shape: f32[32,16], index: 9, kind: input, shape index: {}]
  %s10 = inlined_call_operand.vmem [shape: f32[1,16], index: 10, kind: input, shape index: {}]
  %s11 = inlined_call_operand.vmem [shape: f32[16,4], index: 11, kind: input, shape index: {}]
  %s12 = inlined_call_operand.vmem [shape: f32[1,4], index: 12, kind: input, shape index: {}]
  %s13 = inlined_call_operand.vmem [shape: f32[8,4], index: 13, kind: output, shape index: {}]
  %s14 = sld [smem:[#allocation0]]
  $region66: #{tpu_custom_call.1} parent=0
    _
  %s16 = ssub.s32 1, %s14
  %s17 = scalar_select 0, %s16, %s14
  $region1: #{tpu_custom_call.1} parent=0
    #allocation2 [shape = 'u8[2048]{0}', space=vmem, size = 0x800, scoped, tag = 'input window, operand 1, single buffered']
    #allocation3 [shape = 's32[1]{0}', space=sflag, size = 0x4, scoped, tag = 'scoped memory for tpu_custom_call.1']
    %18 = vsyncpa [#allocation3], 0
    // Predicated region
    $region2: #{tpu_custom_call.1} parent=1 // pred_check
      _
    $region3: #{tpu_custom_call.1} parent=1 // pred_check_branch
      %20 = sbr.rel (0) target = $region5
    $region4: #{tpu_custom_call.1} parent=1 // pred_region
      _
    $region5: #{tpu_custom_call.1} parent=1 // pred_fallthru
      _
    // Predicated region
    $region6: #{tpu_custom_call.1} parent=1 // pred_check
      _
    $region7: #{tpu_custom_call.1} parent=1 // pred_check_branch
      %22 = sbr.rel (0) target = $region9
    $region8: #{tpu_custom_call.1} parent=1 // pred_region
      %s24 = ssub.s32 64, 64
      %25 = vsyncadd [#allocation3], %s24
      %s27 = sshll.u32 [#allocation2], 4
      %s28 = int_to_ptr.vmem [resolvable:$true] %s27
      %30 = dma.hbm_to_vmem [thread:$0]  %s1, 64, %s28, [#allocation3]
    $region9: #{tpu_custom_call.1} parent=1 // pred_fallthru
      _
    // Predicated region
    $region10: #{tpu_custom_call.1} parent=1 // pred_check
      _
    $region11: #{tpu_custom_call.1} parent=1 // pred_check_branch
      %32 = sbr.rel (0) target = $region13
    $region12: #{tpu_custom_call.1} parent=1 // pred_region
      _
    $region13: #{tpu_custom_call.1} parent=1 // pred_fallthru
      _
    // Predicated region
    $region14: #{tpu_custom_call.1} parent=1 // pred_check
      _
    $region15: #{tpu_custom_call.1} parent=1 // pred_check_branch
      %34 = sbr.rel (0) target = $region17
    $region16: #{tpu_custom_call.1} parent=1 // pred_region
      _
    $region17: #{tpu_custom_call.1} parent=1 // pred_fallthru
      _
    // Predicated region
    $region18: #{tpu_custom_call.1} parent=1 // pred_check
      _
    $region19: #{tpu_custom_call.1} parent=1 // pred_check_branch
      %36 = sbr.rel (0) target = $region21
    $region20: #{tpu_custom_call.1} parent=1 // pred_region
      _
    $region21: #{tpu_custom_call.1} parent=1 // pred_fallthru
      _
    // Predicated region
    $region22: #{tpu_custom_call.1} parent=1 // pred_check
      _
    $region23: #{tpu_custom_call.1} parent=1 // pred_check_branch
      %38 = sbr.rel (0) target = $region25
    $region24: #{tpu_custom_call.1} parent=1 // pred_region
      _
    $region25: #{tpu_custom_call.1} parent=1 // pred_fallthru
      _
    // Predicated region
    $region26: #{tpu_custom_call.1} parent=1 // pred_check
      _
    $region27: #{tpu_custom_call.1} parent=1 // pred_check_branch
      %40 = sbr.rel (0) target = $region29
    $region28: #{tpu_custom_call.1} parent=1 // pred_region
      _
    $region29: #{tpu_custom_call.1} parent=1 // pred_fallthru
      _
    // Predicated region
    $region30: #{tpu_custom_call.1} parent=1 // pred_check
      _
    $region31: #{tpu_custom_call.1} parent=1 // pred_check_branch
      %42 = sbr.rel (0) target = $region33
    $region32: #{tpu_custom_call.1} parent=1 // pred_region
      _
    $region33: #{tpu_custom_call.1} parent=1 // pred_fallthru
      _
    // Predicated region
    $region34: #{tpu_custom_call.1} parent=1 // pred_check
      _
    $region35: #{tpu_custom_call.1} parent=1 // pred_check_branch
      %44 = sbr.rel (0) target = $region37
    $region36: #{tpu_custom_call.1} parent=1 // pred_region
      _
    $region37: #{tpu_custom_call.1} parent=1 // pred_fallthru
      _
    // Predicated region
    $region38: #{tpu_custom_call.1} parent=1 // pred_check
      _
    $region39: #{tpu_custom_call.1} parent=1 // pred_check_branch
      %46 = sbr.rel (0) target = $region41
    $region40: #{tpu_custom_call.1} parent=1 // pred_region
      _
    $region41: #{tpu_custom_call.1} parent=1 // pred_fallthru
      _
    // Predicated region
    $region42: #{tpu_custom_call.1} parent=1 // pred_check
      _
    $region43: #{tpu_custom_call.1} parent=1 // pred_check_branch
      %48 = sbr.rel (0) target = $region45
    $region44: #{tpu_custom_call.1} parent=1 // pred_region
      _
    $region45: #{tpu_custom_call.1} parent=1 // pred_fallthru
      _
    // Predicated region
    $region46: #{tpu_custom_call.1} parent=1 // pred_check
      _
    $region47: #{tpu_custom_call.1} parent=1 // pred_check_branch
      %50 = sbr.rel (0) target = $region49
    $region48: #{tpu_custom_call.1} parent=1 // pred_region
      _
    $region49: #{tpu_custom_call.1} parent=1 // pred_fallthru
      _
    // Predicated region
    $region50: #{tpu_custom_call.1} parent=1 // pred_check
      _
    $region51: #{tpu_custom_call.1} parent=1 // pred_check_branch
      %52 = sbr.rel (0) target = $region53
    $region52: #{tpu_custom_call.1} parent=1 // pred_region
      _
    $region53: #{tpu_custom_call.1} parent=1 // pred_fallthru
      _
    // Predicated region
    $region54: #{tpu_custom_call.1} parent=1 // pred_check
      _
    $region55: #{tpu_custom_call.1} parent=1 // pred_check_branch
      %54 = sbr.rel (0) target = $region57
    $region56: #{tpu_custom_call.1} parent=1 // pred_region
      %55 = dma.done [#allocation3], 64
    $region57: #{tpu_custom_call.1} parent=1 // pred_fallthru
      _
    %v57 = vld [vmem:[%s0] sm:$0xff]
    %v58 = vld [vmem:[%s0 + $0x8] sm:$0xff]
    %v59 = vld [vmem:[%s0 + $0x10] sm:$0xff]
    %v60 = vld [vmem:[%s0 + $0x18] sm:$0xff]
    %v61 = vld [vmem:[%s0 + $0x20] sm:$0xff]
    %v62 = vld [vmem:[%s0 + $0x28] sm:$0xff]
    %v63 = vld [vmem:[%s0 + $0x30] sm:$0xff]
    %v64 = vld [vmem:[%s0 + $0x38] sm:$0xff]
    %v65 = vpack.c.bf16 %v58, %v57
    %v66 = vpack.c.bf16 %v60, %v59
    %v67 = vpack.c.bf16 %v62, %v61
    %v68 = vpack.c.bf16 %v64, %v63
    %v69 = vld [vmem:[#allocation2] sm:$0xf]
    %v70 = vpack.c.bf16 %v69, %v69
    %v71 = vld [vmem:[%s2] sm:$0xff]
    %v72 = vld [vmem:[%s2 + $0x8] sm:$0xff]
    %v73 = vld [vmem:[%s2 + $0x10] sm:$0xff]
    %v74 = vld [vmem:[%s2 + $0x18] sm:$0xff]
    %v75 = vpack.c.bf16 %v72, %v71
    %v76 = vpack.c.bf16 %v74, %v73
    %v77 = vld [vmem:[%s3] sm:$0x1]
    %v79 = vlaneseq
    %v80 = vshrl.u32 %v79, 7
    %v81 = vsub.s32 0, %v80
    %v82 = vrot.slane %v77, %v81
    %vm84 = vcmask 31744
    %v86 = vsel %vm84, %v65, 0
    %v89 = vsel %vm84, %v66, 0
    %v92 = vsel %vm84, %v67, 0
    %v95 = vsel %vm84, %v68, 0
    %vm97 = vcmask 1041408
    %v99 = vsel %vm97, %v70, 0
    %101 = vmatprep.subr.bf16.mxu0 0
    %102 = vmatpush1.bf16.msra.mxu0 %v99
    %103 = vmatprep.subr.bf16.mxu0 0
    %104 = vmatpush1.bf16.msra.mxu0 0
    %105 = vmatprep.subr.bf16.mxu0 0
    %106 = vmatpush1.bf16.msra.mxu0 0
    %107 = vmatprep.subr.bf16.mxu0 0
    %108 = vmatpush1.bf16.msra.mxu0 0
    %109 = vmatprep.subr.bf16.mxu0 0
    %110 = vmatpush1.bf16.msra.mxu0 0
    %111 = vmatprep.subr.bf16.mxu0 0
    %112 = vmatpush1.bf16.msra.mxu0 0
    %113 = vmatprep.subr.bf16.mxu0 0
    %114 = vmatpush1.bf16.msra.mxu0 0
    %115 = vmatprep.subr.bf16.mxu0 0
    %116 = vmatpush1.bf16.msra.mxu0 0
    %117 = vmatprep.subr.bf16.mxu0 0
    %118 = vmatpush1.bf16.msra.mxu0 0
    %119 = vmatprep.subr.bf16.mxu0 0
    %120 = vmatpush1.bf16.msra.mxu0 0
    %121 = vmatprep.subr.bf16.mxu0 0
    %122 = vmatpush1.bf16.msra.mxu0 0
    %123 = vmatprep.subr.bf16.mxu0 0
    %124 = vmatpush1.bf16.msra.mxu0 0
    %125 = vmatprep.subr.bf16.mxu0 0
    %126 = vmatpush1.bf16.msra.mxu0 0
    %127 = vmatprep.subr.bf16.mxu0 0
    %128 = vmatpush1.bf16.msra.mxu0 0
    %129 = vmatprep.subr.bf16.mxu0 0
    %130 = vmatpush1.bf16.msra.mxu0 0
    %131 = vmatprep.subr.bf16.mxu0 0
    %132 = vmatpush1.bf16.msra.mxu0 0
    %133 = vmatprep.mubr.bf16.mxu0 0
    %134 = vmatmul.mubr.bf16.gmra.mrb[0].mxu0 %v86
    %v135 = vpop.f32.mrb[0].mxu0
    %v136 = vadd.f32 %v82, %v135
    %v137 = vpop.f32.mrb[0].mxu0
    %v138 = vpop.f32.mrb[0].mxu0
    %v139 = vadd.f32 %v82, %v138
    %v140 = vpop.f32.mrb[0].mxu0
    %141 = vmatprep.mubr.bf16.mxu0 0
    %142 = vmatmul.mubr.bf16.gmra.mrb[0].mxu0 %v89
    %v143 = vpop.f32.mrb[0].mxu0
    %v144 = vadd.f32 %v82, %v143
    %v145 = vpop.f32.mrb[0].mxu0
    %v146 = vpop.f32.mrb[0].mxu0
    %v147 = vadd.f32 %v82, %v146
    %v148 = vpop.f32.mrb[0].mxu0
    %149 = vmatprep.mubr.bf16.mxu0 0
    %150 = vmatmul.mubr.bf16.gmra.mrb[0].mxu0 %v92
    %v151 = vpop.f32.mrb[0].mxu0
    %v152 = vadd.f32 %v82, %v151
    %v153 = vpop.f32.mrb[0].mxu0
    %v154 = vpop.f32.mrb[0].mxu0
    %v155 = vadd.f32 %v82, %v154
    %v156 = vpop.f32.mrb[0].mxu0
    %157 = vmatprep.mubr.bf16.mxu0 0
    %158 = vmatmul.mubr.bf16.gmra.mrb[0].mxu0 %v95
    %v159 = vpop.f32.mrb[0].mxu0
    %v160 = vadd.f32 %v82, %v159
    %v161 = vpop.f32.mrb[0].mxu0
    %v162 = vpop.f32.mrb[0].mxu0
    %v163 = vadd.f32 %v82, %v162
    %v164 = vpop.f32.mrb[0].mxu0
    %165 = vdwg.mxu0
    %vm166 = vcmask 261120
    %v168 = vsel %vm166, 0, 0
    %170 = vmatprep.subr.bf16.mxu0 0
    %171 = vmatpush1.bf16.msra.mxu0 %v75
    %172 = vmatprep.subr.bf16.mxu0 0
    %173 = vmatpush1.bf16.msra.mxu0 %v76
    %174 = vmatprep.subr.bf16.mxu0 0
    %175 = vmatpush1.bf16.msra.mxu0 0
    %176 = vmatprep.subr.bf16.mxu0 0
    %177 = vmatpush1.bf16.msra.mxu0 0
    %178 = vmatprep.subr.bf16.mxu0 0
    %179 = vmatpush1.bf16.msra.mxu0 0
    %180 = vmatprep.subr.bf16.mxu0 0
    %181 = vmatpush1.bf16.msra.mxu0 0
    %182 = vmatprep.subr.bf16.mxu0 0
    %183 = vmatpush1.bf16.msra.mxu0 0
    %184 = vmatprep.subr.bf16.mxu0 0
    %185 = vmatpush1.bf16.msra.mxu0 0
    %186 = vmatprep.subr.bf16.mxu0 0
    %187 = vmatpush1.bf16.msra.mxu0 0
    %188 = vmatprep.subr.bf16.mxu0 0
    %189 = vmatpush1.bf16.msra.mxu0 0
    %190 = vmatprep.subr.bf16.mxu0 0
    %191 = vmatpush1.bf16.msra.mxu0 0
    %192 = vmatprep.subr.bf16.mxu0 0
    %193 = vmatpush1.bf16.msra.mxu0 0
    %194 = vmatprep.subr.bf16.mxu0 0
    %195 = vmatpush1.bf16.msra.mxu0 0
    %196 = vmatprep.subr.bf16.mxu0 0
    %197 = vmatpush1.bf16.msra.mxu0 0
    %198 = vmatprep.subr.bf16.mxu0 0
    %199 = vmatpush1.bf16.msra.mxu0 0
    %200 = vmatprep.subr.bf16.mxu0 0
    %201 = vmatpush1.bf16.msra.mxu0 0
    %202 = vmatprep.mubr.bf16.mxu0 0
    %203 = vmatmul.mubr.bf16.gmra.mrb[0].mxu0 %v168
    %v204 = vpop.f32.mrb[0].mxu0
    %v205 = vadd.f32 0.0, %v204
    %v206 = vpop.f32.mrb[0].mxu0
    %v207 = vpop.f32.mrb[0].mxu0
    %v208 = vpop.f32.mrb[0].mxu0
    %209 = vdwg.mxu0
    %v210 = vadd.f32 %v136, %v205
    %v211 = vxor.u32 %v210, 2147483648
    %v212 = vmul.f32 %v211, 1.442695
    %v213 = vpow.pop %v212
    %v214 = vadd.f32 %v213, 1.0
    %v215 = vrcp.pop %v214
    %v216 = vmul.f32 1.0, %v215
    %v217 = vtanh.pop %v210
    %v218 = vmul.f32 %v216, 0.0
    %220 = vrot.lane.b32.xlu0 %v217, 32
    %v221 = vpop.permute.xlu0 %220
    %v223 = vmul.f32 %v216, %v221
    %225 = vrot.lane.b32.xlu0 %v223, 32
    %v226 = vpop.permute.xlu0 %225
    %v228 = vadd.f32 %v218, %v226
    %v229 = vtanh.pop %v228
    %231 = vrot.lane.b32.xlu0 %v229, 32
    %v232 = vpop.permute.xlu0 %231
    %v234 = vmul.f32 %v216, %v232
    %v235 = vpack.c.bf16 %v234, %v234
    %237 = vrot.lane.b32.xlu0 %v235, 64
    %v238 = vpop.permute.xlu0 %237
    %v240 = vsel %vm166, %v238, 0
    %242 = vmatprep.subr.bf16.mxu0 0
    %243 = vmatpush1.bf16.msra.mxu0 %v75
    %244 = vmatprep.subr.bf16.mxu0 0
    %245 = vmatpush1.bf16.msra.mxu0 %v76
    %246 = vmatprep.subr.bf16.mxu0 0
    %247 = vmatpush1.bf16.msra.mxu0 0
    %248 = vmatprep.subr.bf16.mxu0 0
    %249 = vmatpush1.bf16.msra.mxu0 0
    %250 = vmatprep.subr.bf16.mxu0 0
    %251 = vmatpush1.bf16.msra.mxu0 0
    %252 = vmatprep.subr.bf16.mxu0 0
    %253 = vmatpush1.bf16.msra.mxu0 0
    %254 = vmatprep.subr.bf16.mxu0 0
    %255 = vmatpush1.bf16.msra.mxu0 0
    %256 = vmatprep.subr.bf16.mxu0 0
    %257 = vmatpush1.bf16.msra.mxu0 0
    %258 = vmatprep.subr.bf16.mxu0 0
    %259 = vmatpush1.bf16.msra.mxu0 0
    %260 = vmatprep.subr.bf16.mxu0 0
    %261 = vmatpush1.bf16.msra.mxu0 0
    %262 = vmatprep.subr.bf16.mxu0 0
    %263 = vmatpush1.bf16.msra.mxu0 0
    %264 = vmatprep.subr.bf16.mxu0 0
    %265 = vmatpush1.bf16.msra.mxu0 0
    %266 = vmatprep.subr.bf16.mxu0 0
    %267 = vmatpush1.bf16.msra.mxu0 0
    %268 = vmatprep.subr.bf16.mxu0 0
    %269 = vmatpush1.bf16.msra.mxu0 0
    %270 = vmatprep.subr.bf16.mxu0 0
    %271 = vmatpush1.bf16.msra.mxu0 0
    %272 = vmatprep.subr.bf16.mxu0 0
    %273 = vmatpush1.bf16.msra.mxu0 0
    %274 = vmatprep.mubr.bf16.mxu0 0
    %275 = vmatmul.mubr.bf16.gmra.mrb[0].mxu0 %v240
    %v276 = vpop.f32.mrb[0].mxu0
    %v277 = vadd.f32 0.0, %v276
    %v278 = vpop.f32.mrb[0].mxu0
    %v279 = vpop.f32.mrb[0].mxu0
    %v280 = vpop.f32.mrb[0].mxu0
    %281 = vdwg.mxu0
    %v282 = vadd.f32 %v139, %v277
    %v283 = vxor.u32 %v282, 2147483648
    %v284 = vmul.f32 %v283, 1.442695
    %v285 = vpow.pop %v284
    %v286 = vadd.f32 %v285, 1.0
    %v287 = vrcp.pop %v286
    %v288 = vmul.f32 1.0, %v287
    %v289 = vtanh.pop %v282
    %v290 = vmul.f32 %v288, %v228
    %292 = vrot.lane.b32.xlu0 %v289, 32
    %v293 = vpop.permute.xlu0 %292
    %v295 = vmul.f32 %v288, %v293
    %297 = vrot.lane.b32.xlu0 %v295, 32
    %v298 = vpop.permute.xlu0 %297
    %v300 = vadd.f32 %v290, %v298
    %v301 = vtanh.pop %v300
    %303 = vrot.lane.b32.xlu0 %v301, 32
    %v304 = vpop.permute.xlu0 %303
    %v306 = vmul.f32 %v288, %v304
    %v307 = vpack.c.bf16 %v306, %v306
    %309 = vrot.lane.b32.xlu0 %v307, 64
    %v310 = vpop.permute.xlu0 %309
    %v312 = vsel %vm166, %v310, 0
    %314 = vmatprep.subr.bf16.mxu0 0
    %315 = vmatpush1.bf16.msra.mxu0 %v75
    %316 = vmatprep.subr.bf16.mxu0 0
    %317 = vmatpush1.bf16.msra.mxu0 %v76
    %318 = vmatprep.subr.bf16.mxu0 0
    %319 = vmatpush1.bf16.msra.mxu0 0
    %320 = vmatprep.subr.bf16.mxu0 0
    %321 = vmatpush1.bf16.msra.mxu0 0
    %322 = vmatprep.subr.bf16.mxu0 0
    %323 = vmatpush1.bf16.msra.mxu0 0
    %324 = vmatprep.subr.bf16.mxu0 0
    %325 = vmatpush1.bf16.msra.mxu0 0
    %326 = vmatprep.subr.bf16.mxu0 0
    %327 = vmatpush1.bf16.msra.mxu0 0
    %328 = vmatprep.subr.bf16.mxu0 0
    %329 = vmatpush1.bf16.msra.mxu0 0
    %330 = vmatprep.subr.bf16.mxu0 0
    %331 = vmatpush1.bf16.msra.mxu0 0
    %332 = vmatprep.subr.bf16.mxu0 0
    %333 = vmatpush1.bf16.msra.mxu0 0
    %334 = vmatprep.subr.bf16.mxu0 0
    %335 = vmatpush1.bf16.msra.mxu0 0
    %336 = vmatprep.subr.bf16.mxu0 0
    %337 = vmatpush1.bf16.msra.mxu0 0
    %338 = vmatprep.subr.bf16.mxu0 0
    %339 = vmatpush1.bf16.msra.mxu0 0
    %340 = vmatprep.subr.bf16.mxu0 0
    %341 = vmatpush1.bf16.msra.mxu0 0
    %342 = vmatprep.subr.bf16.mxu0 0
    %343 = vmatpush1.bf16.msra.mxu0 0
    %344 = vmatprep.subr.bf16.mxu0 0
    %345 = vmatpush1.bf16.msra.mxu0 0
    %346 = vmatprep.mubr.bf16.mxu0 0
    %347 = vmatmul.mubr.bf16.gmra.mrb[0].mxu0 %v312
    %v348 = vpop.f32.mrb[0].mxu0
    %v349 = vadd.f32 0.0, %v348
    %v350 = vpop.f32.mrb[0].mxu0
    %v351 = vpop.f32.mrb[0].mxu0
    %v352 = vpop.f32.mrb[0].mxu0
    %353 = vdwg.mxu0
    %v354 = vadd.f32 %v144, %v349
    %v355 = vxor.u32 %v354, 2147483648
    %v356 = vmul.f32 %v355, 1.442695
    %v357 = vpow.pop %v356
    %v358 = vadd.f32 %v357, 1.0
    %v359 = vrcp.pop %v358
    %v360 = vmul.f32 1.0, %v359
    %v361 = vtanh.pop %v354
    %v362 = vmul.f32 %v360, %v300
    %364 = vrot.lane.b32.xlu0 %v361, 32
    %v365 = vpop.permute.xlu0 %364
    %v367 = vmul.f32 %v360, %v365
    %369 = vrot.lane.b32.xlu0 %v367, 32
    %v370 = vpop.permute.xlu0 %369
    %v372 = vadd.f32 %v362, %v370
    %v373 = vtanh.pop %v372
    %375 = vrot.lane.b32.xlu0 %v373, 32
    %v376 = vpop.permute.xlu0 %375
    %v378 = vmul.f32 %v360, %v376
    %v379 = vpack.c.bf16 %v378, %v378
    %381 = vrot.lane.b32.xlu0 %v379, 64
    %v382 = vpop.permute.xlu0 %381
    %v384 = vsel %vm166, %v382, 0
    %386 = vmatprep.subr.bf16.mxu0 0
    %387 = vmatpush1.bf16.msra.mxu0 %v75
    %388 = vmatprep.subr.bf16.mxu0 0
    %389 = vmatpush1.bf16.msra.mxu0 %v76
    %390 = vmatprep.subr.bf16.mxu0 0
    %391 = vmatpush1.bf16.msra.mxu0 0
    %392 = vmatprep.subr.bf16.mxu0 0
    %393 = vmatpush1.bf16.msra.mxu0 0
    %394 = vmatprep.subr.bf16.mxu0 0
    %395 = vmatpush1.bf16.msra.mxu0 0
    %396 = vmatprep.subr.bf16.mxu0 0
    %397 = vmatpush1.bf16.msra.mxu0 0
    %398 = vmatprep.subr.bf16.mxu0 0
    %399 = vmatpush1.bf16.msra.mxu0 0
    %400 = vmatprep.subr.bf16.mxu0 0
    %401 = vmatpush1.bf16.msra.mxu0 0
    %402 = vmatprep.subr.bf16.mxu0 0
    %403 = vmatpush1.bf16.msra.mxu0 0
    %404 = vmatprep.subr.bf16.mxu0 0
    %405 = vmatpush1.bf16.msra.mxu0 0
    %406 = vmatprep.subr.bf16.mxu0 0
    %407 = vmatpush1.bf16.msra.mxu0 0
    %408 = vmatprep.subr.bf16.mxu0 0
    %409 = vmatpush1.bf16.msra.mxu0 0
    %410 = vmatprep.subr.bf16.mxu0 0
    %411 = vmatpush1.bf16.msra.mxu0 0
    %412 = vmatprep.subr.bf16.mxu0 0
    %413 = vmatpush1.bf16.msra.mxu0 0
    %414 = vmatprep.subr.bf16.mxu0 0
    %415 = vmatpush1.bf16.msra.mxu0 0
    %416 = vmatprep.subr.bf16.mxu0 0
    %417 = vmatpush1.bf16.msra.mxu0 0
    %418 = vmatprep.mubr.bf16.mxu0 0
    %419 = vmatmul.mubr.bf16.gmra.mrb[0].mxu0 %v384
    %v420 = vpop.f32.mrb[0].mxu0
    %v421 = vadd.f32 0.0, %v420
    %v422 = vpop.f32.mrb[0].mxu0
    %v423 = vpop.f32.mrb[0].mxu0
    %v424 = vpop.f32.mrb[0].mxu0
    %425 = vdwg.mxu0
    %v426 = vadd.f32 %v147, %v421
    %v427 = vxor.u32 %v426, 2147483648
    %v428 = vmul.f32 %v427, 1.442695
    %v429 = vpow.pop %v428
    %v430 = vadd.f32 %v429, 1.0
    %v431 = vrcp.pop %v430
    %v432 = vmul.f32 1.0, %v431
    %v433 = vtanh.pop %v426
    %v434 = vmul.f32 %v432, %v372
    %436 = vrot.lane.b32.xlu0 %v433, 32
    %v437 = vpop.permute.xlu0 %436
    %v439 = vmul.f32 %v432, %v437
    %441 = vrot.lane.b32.xlu0 %v439, 32
    %v442 = vpop.permute.xlu0 %441
    %v444 = vadd.f32 %v434, %v442
    %v445 = vtanh.pop %v444
    %447 = vrot.lane.b32.xlu0 %v445, 32
    %v448 = vpop.permute.xlu0 %447
    %v450 = vmul.f32 %v432, %v448
    %v451 = vpack.c.bf16 %v450, %v450
    %453 = vrot.lane.b32.xlu0 %v451, 64
    %v454 = vpop.permute.xlu0 %453
    %v456 = vsel %vm166, %v454, 0
    %458 = vmatprep.subr.bf16.mxu0 0
    %459 = vmatpush1.bf16.msra.mxu0 %v75
    %460 = vmatprep.subr.bf16.mxu0 0
    %461 = vmatpush1.bf16.msra.mxu0 %v76
    %462 = vmatprep.subr.bf16.mxu0 0
    %463 = vmatpush1.bf16.msra.mxu0 0
    %464 = vmatprep.subr.bf16.mxu0 0
    %465 = vmatpush1.bf16.msra.mxu0 0
    %466 = vmatprep.subr.bf16.mxu0 0
    %467 = vmatpush1.bf16.msra.mxu0 0
    %468 = vmatprep.subr.bf16.mxu0 0
    %469 = vmatpush1.bf16.msra.mxu0 0
    %470 = vmatprep.subr.bf16.mxu0 0
    %471 = vmatpush1.bf16.msra.mxu0 0
    %472 = vmatprep.subr.bf16.mxu0 0
    %473 = vmatpush1.bf16.msra.mxu0 0
    %474 = vmatprep.subr.bf16.mxu0 0
    %475 = vmatpush1.bf16.msra.mxu0 0
    %476 = vmatprep.subr.bf16.mxu0 0
    %477 = vmatpush1.bf16.msra.mxu0 0
    %478 = vmatprep.subr.bf16.mxu0 0
    %479 = vmatpush1.bf16.msra.mxu0 0
    %480 = vmatprep.subr.bf16.mxu0 0
    %481 = vmatpush1.bf16.msra.mxu0 0
    %482 = vmatprep.subr.bf16.mxu0 0
    %483 = vmatpush1.bf16.msra.mxu0 0
    %484 = vmatprep.subr.bf16.mxu0 0
    %485 = vmatpush1.bf16.msra.mxu0 0
    %486 = vmatprep.subr.bf16.mxu0 0
    %487 = vmatpush1.bf16.msra.mxu0 0
    %488 = vmatprep.subr.bf16.mxu0 0
    %489 = vmatpush1.bf16.msra.mxu0 0
    %490 = vmatprep.mubr.bf16.mxu0 0
    %491 = vmatmul.mubr.bf16.gmra.mrb[0].mxu0 %v456
    %v492 = vpop.f32.mrb[0].mxu0
    %v493 = vadd.f32 0.0, %v492
    %v494 = vpop.f32.mrb[0].mxu0
    %v495 = vpop.f32.mrb[0].mxu0
    %v496 = vpop.f32.mrb[0].mxu0
    %497 = vdwg.mxu0
    %v498 = vadd.f32 %v152, %v493
    %v499 = vxor.u32 %v498, 2147483648
    %v500 = vmul.f32 %v499, 1.442695
    %v501 = vpow.pop %v500
    %v502 = vadd.f32 %v501, 1.0
    %v503 = vrcp.pop %v502
    %v504 = vmul.f32 1.0, %v503
    %v505 = vtanh.pop %v498
    %v506 = vmul.f32 %v504, %v444
    %508 = vrot.lane.b32.xlu0 %v505, 32
    %v509 = vpop.permute.xlu0 %508
    %v511 = vmul.f32 %v504, %v509
    %513 = vrot.lane.b32.xlu0 %v511, 32
    %v514 = vpop.permute.xlu0 %513
    %v516 = vadd.f32 %v506, %v514
    %v517 = vtanh.pop %v516
    %519 = vrot.lane.b32.xlu0 %v517, 32
    %v520 = vpop.permute.xlu0 %519
    %v522 = vmul.f32 %v504, %v520
    %v523 = vpack.c.bf16 %v522, %v522
    %525 = vrot.lane.b32.xlu0 %v523, 64
    %v526 = vpop.permute.xlu0 %525
    %v528 = vsel %vm166, %v526, 0
    %530 = vmatprep.subr.bf16.mxu0 0
    %531 = vmatpush1.bf16.msra.mxu0 %v75
    %532 = vmatprep.subr.bf16.mxu0 0
    %533 = vmatpush1.bf16.msra.mxu0 %v76
    %534 = vmatprep.subr.bf16.mxu0 0
    %535 = vmatpush1.bf16.msra.mxu0 0
    %536 = vmatprep.subr.bf16.mxu0 0
    %537 = vmatpush1.bf16.msra.mxu0 0
    %538 = vmatprep.subr.bf16.mxu0 0
    %539 = vmatpush1.bf16.msra.mxu0 0
    %540 = vmatprep.subr.bf16.mxu0 0
    %541 = vmatpush1.bf16.msra.mxu0 0
    %542 = vmatprep.subr.bf16.mxu0 0
    %543 = vmatpush1.bf16.msra.mxu0 0
    %544 = vmatprep.subr.bf16.mxu0 0
    %545 = vmatpush1.bf16.msra.mxu0 0
    %546 = vmatprep.subr.bf16.mxu0 0
    %547 = vmatpush1.bf16.msra.mxu0 0
    %548 = vmatprep.subr.bf16.mxu0 0
    %549 = vmatpush1.bf16.msra.mxu0 0
    %550 = vmatprep.subr.bf16.mxu0 0
    %551 = vmatpush1.bf16.msra.mxu0 0
    %552 = vmatprep.subr.bf16.mxu0 0
    %553 = vmatpush1.bf16.msra.mxu0 0
    %554 = vmatprep.subr.bf16.mxu0 0
    %555 = vmatpush1.bf16.msra.mxu0 0
    %556 = vmatprep.subr.bf16.mxu0 0
    %557 = vmatpush1.bf16.msra.mxu0 0
    %558 = vmatprep.subr.bf16.mxu0 0
    %559 = vmatpush1.bf16.msra.mxu0 0
    %560 = vmatprep.subr.bf16.mxu0 0
    %561 = vmatpush1.bf16.msra.mxu0 0
    %562 = vmatprep.mubr.bf16.mxu0 0
    %563 = vmatmul.mubr.bf16.gmra.mrb[0].mxu0 %v528
    %v564 = vpop.f32.mrb[0].mxu0
    %v565 = vadd.f32 0.0, %v564
    %v566 = vpop.f32.mrb[0].mxu0
    %v567 = vpop.f32.mrb[0].mxu0
    %v568 = vpop.f32.mrb[0].mxu0
    %569 = vdwg.mxu0
    %v570 = vadd.f32 %v155, %v565
    %v571 = vxor.u32 %v570, 2147483648
    %v572 = vmul.f32 %v571, 1.442695
    %v573 = vpow.pop %v572
    %v574 = vadd.f32 %v573, 1.0
    %v575 = vrcp.pop %v574
    %v576 = vmul.f32 1.0, %v575
    %v577 = vtanh.pop %v570
    %v578 = vmul.f32 %v576, %v516
    %580 = vrot.lane.b32.xlu0 %v577, 32
    %v581 = vpop.permute.xlu0 %580
    %v583 = vmul.f32 %v576, %v581
    %585 = vrot.lane.b32.xlu0 %v583, 32
    %v586 = vpop.permute.xlu0 %585
    %v588 = vadd.f32 %v578, %v586
    %v589 = vtanh.pop %v588
    %591 = vrot.lane.b32.xlu0 %v589, 32
    %v592 = vpop.permute.xlu0 %591
    %v594 = vmul.f32 %v576, %v592
    %v595 = vpack.c.bf16 %v594, %v594
    %597 = vrot.lane.b32.xlu0 %v595, 64
    %v598 = vpop.permute.xlu0 %597
    %v600 = vsel %vm166, %v598, 0
    %602 = vmatprep.subr.bf16.mxu0 0
    %603 = vmatpush1.bf16.msra.mxu0 %v75
    %604 = vmatprep.subr.bf16.mxu0 0
    %605 = vmatpush1.bf16.msra.mxu0 %v76
    %606 = vmatprep.subr.bf16.mxu0 0
    %607 = vmatpush1.bf16.msra.mxu0 0
    %608 = vmatprep.subr.bf16.mxu0 0
    %609 = vmatpush1.bf16.msra.mxu0 0
    %610 = vmatprep.subr.bf16.mxu0 0
    %611 = vmatpush1.bf16.msra.mxu0 0
    %612 = vmatprep.subr.bf16.mxu0 0
    %613 = vmatpush1.bf16.msra.mxu0 0
    %614 = vmatprep.subr.bf16.mxu0 0
    %615 = vmatpush1.bf16.msra.mxu0 0
    %616 = vmatprep.subr.bf16.mxu0 0
    %617 = vmatpush1.bf16.msra.mxu0 0
    %618 = vmatprep.subr.bf16.mxu0 0
    %619 = vmatpush1.bf16.msra.mxu0 0
    %620 = vmatprep.subr.bf16.mxu0 0
    %621 = vmatpush1.bf16.msra.mxu0 0
    %622 = vmatprep.subr.bf16.mxu0 0
    %623 = vmatpush1.bf16.msra.mxu0 0
    %624 = vmatprep.subr.bf16.mxu0 0
    %625 = vmatpush1.bf16.msra.mxu0 0
    %626 = vmatprep.subr.bf16.mxu0 0
    %627 = vmatpush1.bf16.msra.mxu0 0
    %628 = vmatprep.subr.bf16.mxu0 0
    %629 = vmatpush1.bf16.msra.mxu0 0
    %630 = vmatprep.subr.bf16.mxu0 0
    %631 = vmatpush1.bf16.msra.mxu0 0
    %632 = vmatprep.subr.bf16.mxu0 0
    %633 = vmatpush1.bf16.msra.mxu0 0
    %634 = vmatprep.mubr.bf16.mxu0 0
    %635 = vmatmul.mubr.bf16.gmra.mrb[0].mxu0 %v600
    %v636 = vpop.f32.mrb[0].mxu0
    %v637 = vadd.f32 0.0, %v636
    %v638 = vpop.f32.mrb[0].mxu0
    %v639 = vpop.f32.mrb[0].mxu0
    %v640 = vpop.f32.mrb[0].mxu0
    %641 = vdwg.mxu0
    %v642 = vadd.f32 %v160, %v637
    %v643 = vxor.u32 %v642, 2147483648
    %v644 = vmul.f32 %v643, 1.442695
    %v645 = vpow.pop %v644
    %v646 = vadd.f32 %v645, 1.0
    %v647 = vrcp.pop %v646
    %v648 = vmul.f32 1.0, %v647
    %v649 = vtanh.pop %v642
    %v650 = vmul.f32 %v648, %v588
    %652 = vrot.lane.b32.xlu0 %v649, 32
    %v653 = vpop.permute.xlu0 %652
    %v655 = vmul.f32 %v648, %v653
    %657 = vrot.lane.b32.xlu0 %v655, 32
    %v658 = vpop.permute.xlu0 %657
    %v660 = vadd.f32 %v650, %v658
    %v661 = vtanh.pop %v660
    %663 = vrot.lane.b32.xlu0 %v661, 32
    %v664 = vpop.permute.xlu0 %663
    %v666 = vmul.f32 %v648, %v664
    %v667 = vpack.c.bf16 %v666, %v666
    %669 = vrot.lane.b32.xlu0 %v667, 64
    %v670 = vpop.permute.xlu0 %669
    %v672 = vsel %vm166, %v670, 0
    %674 = vmatprep.subr.bf16.mxu0 0
    %675 = vmatpush1.bf16.msra.mxu0 %v75
    %676 = vmatprep.subr.bf16.mxu0 0
    %677 = vmatpush1.bf16.msra.mxu0 %v76
    %678 = vmatprep.subr.bf16.mxu0 0
    %679 = vmatpush1.bf16.msra.mxu0 0
    %680 = vmatprep.subr.bf16.mxu0 0
    %681 = vmatpush1.bf16.msra.mxu0 0
    %682 = vmatprep.subr.bf16.mxu0 0
    %683 = vmatpush1.bf16.msra.mxu0 0
    %684 = vmatprep.subr.bf16.mxu0 0
    %685 = vmatpush1.bf16.msra.mxu0 0
    %686 = vmatprep.subr.bf16.mxu0 0
    %687 = vmatpush1.bf16.msra.mxu0 0
    %688 = vmatprep.subr.bf16.mxu0 0
    %689 = vmatpush1.bf16.msra.mxu0 0
    %690 = vmatprep.subr.bf16.mxu0 0
    %691 = vmatpush1.bf16.msra.mxu0 0
    %692 = vmatprep.subr.bf16.mxu0 0
    %693 = vmatpush1.bf16.msra.mxu0 0
    %694 = vmatprep.subr.bf16.mxu0 0
    %695 = vmatpush1.bf16.msra.mxu0 0
    %696 = vmatprep.subr.bf16.mxu0 0
    %697 = vmatpush1.bf16.msra.mxu0 0
    %698 = vmatprep.subr.bf16.mxu0 0
    %699 = vmatpush1.bf16.msra.mxu0 0
    %700 = vmatprep.subr.bf16.mxu0 0
    %701 = vmatpush1.bf16.msra.mxu0 0
    %702 = vmatprep.subr.bf16.mxu0 0
    %703 = vmatpush1.bf16.msra.mxu0 0
    %704 = vmatprep.subr.bf16.mxu0 0
    %705 = vmatpush1.bf16.msra.mxu0 0
    %706 = vmatprep.mubr.bf16.mxu0 0
    %707 = vmatmul.mubr.bf16.gmra.mrb[0].mxu0 %v672
    %v708 = vpop.f32.mrb[0].mxu0
    %v709 = vadd.f32 0.0, %v708
    %v710 = vpop.f32.mrb[0].mxu0
    %v711 = vpop.f32.mrb[0].mxu0
    %v712 = vpop.f32.mrb[0].mxu0
    %713 = vdwg.mxu0
    %v714 = vadd.f32 %v163, %v709
    %v715 = vxor.u32 %v714, 2147483648
    %v716 = vmul.f32 %v715, 1.442695
    %v717 = vpow.pop %v716
    %v718 = vadd.f32 %v717, 1.0
    %v719 = vrcp.pop %v718
    %v720 = vmul.f32 1.0, %v719
    %v721 = vtanh.pop %v714
    %v722 = vmul.f32 %v720, %v660
    %724 = vrot.lane.b32.xlu0 %v721, 32
    %v725 = vpop.permute.xlu0 %724
    %v727 = vmul.f32 %v720, %v725
    %729 = vrot.lane.b32.xlu0 %v727, 32
    %v730 = vpop.permute.xlu0 %729
    %v732 = vadd.f32 %v722, %v730
    %v733 = vtanh.pop %v732
    %735 = vrot.lane.b32.xlu0 %v733, 32
    %v736 = vpop.permute.xlu0 %735
    %v738 = vmul.f32 %v720, %v736
    %v739 = vpack.c.bf16 %v306, %v234
    %v740 = vpack.c.bf16 %v450, %v378
    %v741 = vpack.c.bf16 %v594, %v522
    %v742 = vpack.c.bf16 %v738, %v666
    %v743 = vld [vmem:[%s4] sm:$0xff]
    %v744 = vld [vmem:[%s4 + $0x8] sm:$0xff]
    %v745 = vld [vmem:[%s4 + $0x10] sm:$0xff]
    %v746 = vld [vmem:[%s4 + $0x18] sm:$0xff]
    %v747 = vpack.c.bf16 %v744, %v743
    %v748 = vpack.c.bf16 %v746, %v745
    %v749 = vld [vmem:[%s5] sm:$0xff]
    %v750 = vld [vmem:[%s5 + $0x8] sm:$0xff]
    %v751 = vld [vmem:[%s5 + $0x10] sm:$0xff]
    %v752 = vld [vmem:[%s5 + $0x18] sm:$0xff]
    %v753 = vpack.c.bf16 %v750, %v749
    %v754 = vpack.c.bf16 %v752, %v751
    %v755 = vld [vmem:[%s6] sm:$0x1]
    %v757 = vlaneseq
    %v758 = vshrl.u32 %v757, 7
    %v759 = vsub.s32 0, %v758
    %v760 = vrot.slane %v755, %v759
    %766 = vrot.lane.b32.xlu0 %v739, 64
    %v767 = vpop.permute.xlu0 %766
    %768 = vrot.lane.b32.xlu0 %v740, 64
    %v769 = vpop.permute.xlu0 %768
    %770 = vrot.lane.b32.xlu0 %v741, 64
    %v771 = vpop.permute.xlu0 %770
    %772 = vrot.lane.b32.xlu0 %v742, 64
    %v773 = vpop.permute.xlu0 %772
    %v775 = vsel %vm166, %v767, 0
    %v778 = vsel %vm166, %v769, 0
    %v781 = vsel %vm166, %v771, 0
    %v784 = vsel %vm166, %v773, 0
    %786 = vmatprep.subr.bf16.mxu0 0
    %787 = vmatpush1.bf16.msra.mxu0 %v747
    %788 = vmatprep.subr.bf16.mxu0 0
    %789 = vmatpush1.bf16.msra.mxu0 %v748
    %790 = vmatprep.subr.bf16.mxu0 0
    %791 = vmatpush1.bf16.msra.mxu0 0
    %792 = vmatprep.subr.bf16.mxu0 0
    %793 = vmatpush1.bf16.msra.mxu0 0
    %794 = vmatprep.subr.bf16.mxu0 0
    %795 = vmatpush1.bf16.msra.mxu0 0
    %796 = vmatprep.subr.bf16.mxu0 0
    %797 = vmatpush1.bf16.msra.mxu0 0
    %798 = vmatprep.subr.bf16.mxu0 0
    %799 = vmatpush1.bf16.msra.mxu0 0
    %800 = vmatprep.subr.bf16.mxu0 0
    %801 = vmatpush1.bf16.msra.mxu0 0
    %802 = vmatprep.subr.bf16.mxu0 0
    %803 = vmatpush1.bf16.msra.mxu0 0
    %804 = vmatprep.subr.bf16.mxu0 0
    %805 = vmatpush1.bf16.msra.mxu0 0
    %806 = vmatprep.subr.bf16.mxu0 0
    %807 = vmatpush1.bf16.msra.mxu0 0
    %808 = vmatprep.subr.bf16.mxu0 0
    %809 = vmatpush1.bf16.msra.mxu0 0
    %810 = vmatprep.subr.bf16.mxu0 0
    %811 = vmatpush1.bf16.msra.mxu0 0
    %812 = vmatprep.subr.bf16.mxu0 0
    %813 = vmatpush1.bf16.msra.mxu0 0
    %814 = vmatprep.subr.bf16.mxu0 0
    %815 = vmatpush1.bf16.msra.mxu0 0
    %816 = vmatprep.subr.bf16.mxu0 0
    %817 = vmatpush1.bf16.msra.mxu0 0
    %818 = vmatprep.mubr.bf16.mxu0 0
    %819 = vmatmul.mubr.bf16.gmra.mrb[0].mxu0 %v775
    %v820 = vpop.f32.mrb[0].mxu0
    %v821 = vadd.f32 %v760, %v820
    %v822 = vpop.f32.mrb[0].mxu0
    %v823 = vpop.f32.mrb[0].mxu0
    %v824 = vadd.f32 %v760, %v823
    %v825 = vpop.f32.mrb[0].mxu0
    %826 = vmatprep.mubr.bf16.mxu0 0
    %827 = vmatmul.mubr.bf16.gmra.mrb[0].mxu0 %v778
    %v828 = vpop.f32.mrb[0].mxu0
    %v829 = vadd.f32 %v760, %v828
    %v830 = vpop.f32.mrb[0].mxu0
    %v831 = vpop.f32.mrb[0].mxu0
    %v832 = vadd.f32 %v760, %v831
    %v833 = vpop.f32.mrb[0].mxu0
    %834 = vmatprep.mubr.bf16.mxu0 0
    %835 = vmatmul.mubr.bf16.gmra.mrb[0].mxu0 %v781
    %v836 = vpop.f32.mrb[0].mxu0
    %v837 = vadd.f32 %v760, %v836
    %v838 = vpop.f32.mrb[0].mxu0
    %v839 = vpop.f32.mrb[0].mxu0
    %v840 = vadd.f32 %v760, %v839
    %v841 = vpop.f32.mrb[0].mxu0
    %842 = vmatprep.mubr.bf16.mxu0 0
    %843 = vmatmul.mubr.bf16.gmra.mrb[0].mxu0 %v784
    %v844 = vpop.f32.mrb[0].mxu0
    %v845 = vadd.f32 %v760, %v844
    %v846 = vpop.f32.mrb[0].mxu0
    %v847 = vpop.f32.mrb[0].mxu0
    %v848 = vadd.f32 %v760, %v847
    %v849 = vpop.f32.mrb[0].mxu0
    %850 = vdwg.mxu0
    %851 = vmatprep.subr.bf16.mxu0 0
    %852 = vmatpush1.bf16.msra.mxu0 %v753
    %853 = vmatprep.subr.bf16.mxu0 0
    %854 = vmatpush1.bf16.msra.mxu0 %v754
    %855 = vmatprep.subr.bf16.mxu0 0
    %856 = vmatpush1.bf16.msra.mxu0 0
    %857 = vmatprep.subr.bf16.mxu0 0
    %858 = vmatpush1.bf16.msra.mxu0 0
    %859 = vmatprep.subr.bf16.mxu0 0
    %860 = vmatpush1.bf16.msra.mxu0 0
    %861 = vmatprep.subr.bf16.mxu0 0
    %862 = vmatpush1.bf16.msra.mxu0 0
    %863 = vmatprep.subr.bf16.mxu0 0
    %864 = vmatpush1.bf16.msra.mxu0 0
    %865 = vmatprep.subr.bf16.mxu0 0
    %866 = vmatpush1.bf16.msra.mxu0 0
    %867 = vmatprep.subr.bf16.mxu0 0
    %868 = vmatpush1.bf16.msra.mxu0 0
    %869 = vmatprep.subr.bf16.mxu0 0
    %870 = vmatpush1.bf16.msra.mxu0 0
    %871 = vmatprep.subr.bf16.mxu0 0
    %872 = vmatpush1.bf16.msra.mxu0 0
    %873 = vmatprep.subr.bf16.mxu0 0
    %874 = vmatpush1.bf16.msra.mxu0 0
    %875 = vmatprep.subr.bf16.mxu0 0
    %876 = vmatpush1.bf16.msra.mxu0 0
    %877 = vmatprep.subr.bf16.mxu0 0
    %878 = vmatpush1.bf16.msra.mxu0 0
    %879 = vmatprep.subr.bf16.mxu0 0
    %880 = vmatpush1.bf16.msra.mxu0 0
    %881 = vmatprep.subr.bf16.mxu0 0
    %882 = vmatpush1.bf16.msra.mxu0 0
    %883 = vmatprep.mubr.bf16.mxu0 0
    %884 = vmatmul.mubr.bf16.gmra.mrb[0].mxu0 %v168
    %v885 = vpop.f32.mrb[0].mxu0
    %v886 = vadd.f32 0.0, %v885
    %v887 = vpop.f32.mrb[0].mxu0
    %v888 = vpop.f32.mrb[0].mxu0
    %v889 = vpop.f32.mrb[0].mxu0
    %890 = vdwg.mxu0
    %v891 = vadd.f32 %v821, %v886
    %v892 = vxor.u32 %v891, 2147483648
    %v893 = vmul.f32 %v892, 1.442695
    %v894 = vpow.pop %v893
    %v895 = vadd.f32 %v894, 1.0
    %v896 = vrcp.pop %v895
    %v897 = vmul.f32 1.0, %v896
    %v898 = vtanh.pop %v891
    %v899 = vmul.f32 %v897, 0.0
    %901 = vrot.lane.b32.xlu0 %v898, 32
    %v902 = vpop.permute.xlu0 %901
    %v904 = vmul.f32 %v897, %v902
    %906 = vrot.lane.b32.xlu0 %v904, 32
    %v907 = vpop.permute.xlu0 %906
    %v909 = vadd.f32 %v899, %v907
    %v910 = vtanh.pop %v909
    %912 = vrot.lane.b32.xlu0 %v910, 32
    %v913 = vpop.permute.xlu0 %912
    %v915 = vmul.f32 %v897, %v913
    %v916 = vpack.c.bf16 %v915, %v915
    %918 = vrot.lane.b32.xlu0 %v916, 64
    %v919 = vpop.permute.xlu0 %918
    %v921 = vsel %vm166, %v919, 0
    %923 = vmatprep.subr.bf16.mxu0 0
    %924 = vmatpush1.bf16.msra.mxu0 %v753
    %925 = vmatprep.subr.bf16.mxu0 0
    %926 = vmatpush1.bf16.msra.mxu0 %v754
    %927 = vmatprep.subr.bf16.mxu0 0
    %928 = vmatpush1.bf16.msra.mxu0 0
    %929 = vmatprep.subr.bf16.mxu0 0
    %930 = vmatpush1.bf16.msra.mxu0 0
    %931 = vmatprep.subr.bf16.mxu0 0
    %932 = vmatpush1.bf16.msra.mxu0 0
    %933 = vmatprep.subr.bf16.mxu0 0
    %934 = vmatpush1.bf16.msra.mxu0 0
    %935 = vmatprep.subr.bf16.mxu0 0
    %936 = vmatpush1.bf16.msra.mxu0 0
    %937 = vmatprep.subr.bf16.mxu0 0
    %938 = vmatpush1.bf16.msra.mxu0 0
    %939 = vmatprep.subr.bf16.mxu0 0
    %940 = vmatpush1.bf16.msra.mxu0 0
    %941 = vmatprep.subr.bf16.mxu0 0
    %942 = vmatpush1.bf16.msra.mxu0 0
    %943 = vmatprep.subr.bf16.mxu0 0
    %944 = vmatpush1.bf16.msra.mxu0 0
    %945 = vmatprep.subr.bf16.mxu0 0
    %946 = vmatpush1.bf16.msra.mxu0 0
    %947 = vmatprep.subr.bf16.mxu0 0
    %948 = vmatpush1.bf16.msra.mxu0 0
    %949 = vmatprep.subr.bf16.mxu0 0
    %950 = vmatpush1.bf16.msra.mxu0 0
    %951 = vmatprep.subr.bf16.mxu0 0
    %952 = vmatpush1.bf16.msra.mxu0 0
    %953 = vmatprep.subr.bf16.mxu0 0
    %954 = vmatpush1.bf16.msra.mxu0 0
    %955 = vmatprep.mubr.bf16.mxu0 0
    %956 = vmatmul.mubr.bf16.gmra.mrb[0].mxu0 %v921
    %v957 = vpop.f32.mrb[0].mxu0
    %v958 = vadd.f32 0.0, %v957
    %v959 = vpop.f32.mrb[0].mxu0
    %v960 = vpop.f32.mrb[0].mxu0
    %v961 = vpop.f32.mrb[0].mxu0
    %962 = vdwg.mxu0
    %v963 = vadd.f32 %v824, %v958
    %v964 = vxor.u32 %v963, 2147483648
    %v965 = vmul.f32 %v964, 1.442695
    %v966 = vpow.pop %v965
    %v967 = vadd.f32 %v966, 1.0
    %v968 = vrcp.pop %v967
    %v969 = vmul.f32 1.0, %v968
    %v970 = vtanh.pop %v963
    %v971 = vmul.f32 %v969, %v909
    %973 = vrot.lane.b32.xlu0 %v970, 32
    %v974 = vpop.permute.xlu0 %973
    %v976 = vmul.f32 %v969, %v974
    %978 = vrot.lane.b32.xlu0 %v976, 32
    %v979 = vpop.permute.xlu0 %978
    %v981 = vadd.f32 %v971, %v979
    %v982 = vtanh.pop %v981
    %984 = vrot.lane.b32.xlu0 %v982, 32
    %v985 = vpop.permute.xlu0 %984
    %v987 = vmul.f32 %v969, %v985
    %v988 = vpack.c.bf16 %v987, %v987
    %990 = vrot.lane.b32.xlu0 %v988, 64
    %v991 = vpop.permute.xlu0 %990
    %v993 = vsel %vm166, %v991, 0
    %995 = vmatprep.subr.bf16.mxu0 0
    %996 = vmatpush1.bf16.msra.mxu0 %v753
    %997 = vmatprep.subr.bf16.mxu0 0
    %998 = vmatpush1.bf16.msra.mxu0 %v754
    %999 = vmatprep.subr.bf16.mxu0 0
    %1000 = vmatpush1.bf16.msra.mxu0 0
    %1001 = vmatprep.subr.bf16.mxu0 0
    %1002 = vmatpush1.bf16.msra.mxu0 0
    %1003 = vmatprep.subr.bf16.mxu0 0
    %1004 = vmatpush1.bf16.msra.mxu0 0
    %1005 = vmatprep.subr.bf16.mxu0 0
    %1006 = vmatpush1.bf16.msra.mxu0 0
    %1007 = vmatprep.subr.bf16.mxu0 0
    %1008 = vmatpush1.bf16.msra.mxu0 0
    %1009 = vmatprep.subr.bf16.mxu0 0
    %1010 = vmatpush1.bf16.msra.mxu0 0
    %1011 = vmatprep.subr.bf16.mxu0 0
    %1012 = vmatpush1.bf16.msra.mxu0 0
    %1013 = vmatprep.subr.bf16.mxu0 0
    %1014 = vmatpush1.bf16.msra.mxu0 0
    %1015 = vmatprep.subr.bf16.mxu0 0
    %1016 = vmatpush1.bf16.msra.mxu0 0
    %1017 = vmatprep.subr.bf16.mxu0 0
    %1018 = vmatpush1.bf16.msra.mxu0 0
    %1019 = vmatprep.subr.bf16.mxu0 0
    %1020 = vmatpush1.bf16.msra.mxu0 0
    %1021 = vmatprep.subr.bf16.mxu0 0
    %1022 = vmatpush1.bf16.msra.mxu0 0
    %1023 = vmatprep.subr.bf16.mxu0 0
    %1024 = vmatpush1.bf16.msra.mxu0 0
    %1025 = vmatprep.subr.bf16.mxu0 0
    %1026 = vmatpush1.bf16.msra.mxu0 0
    %1027 = vmatprep.mubr.bf16.mxu0 0
    %1028 = vmatmul.mubr.bf16.gmra.mrb[0].mxu0 %v993
    %v1029 = vpop.f32.mrb[0].mxu0
    %v1030 = vadd.f32 0.0, %v1029
    %v1031 = vpop.f32.mrb[0].mxu0
    %v1032 = vpop.f32.mrb[0].mxu0
    %v1033 = vpop.f32.mrb[0].mxu0
    %1034 = vdwg.mxu0
    %v1035 = vadd.f32 %v829, %v1030
    %v1036 = vxor.u32 %v1035, 2147483648
    %v1037 = vmul.f32 %v1036, 1.442695
    %v1038 = vpow.pop %v1037
    %v1039 = vadd.f32 %v1038, 1.0
    %v1040 = vrcp.pop %v1039
    %v1041 = vmul.f32 1.0, %v1040
    %v1042 = vtanh.pop %v1035
    %v1043 = vmul.f32 %v1041, %v981
    %1045 = vrot.lane.b32.xlu0 %v1042, 32
    %v1046 = vpop.permute.xlu0 %1045
    %v1048 = vmul.f32 %v1041, %v1046
    %1050 = vrot.lane.b32.xlu0 %v1048, 32
    %v1051 = vpop.permute.xlu0 %1050
    %v1053 = vadd.f32 %v1043, %v1051
    %v1054 = vtanh.pop %v1053
    %1056 = vrot.lane.b32.xlu0 %v1054, 32
    %v1057 = vpop.permute.xlu0 %1056
    %v1059 = vmul.f32 %v1041, %v1057
    %v1060 = vpack.c.bf16 %v1059, %v1059
    %1062 = vrot.lane.b32.xlu0 %v1060, 64
    %v1063 = vpop.permute.xlu0 %1062
    %v1065 = vsel %vm166, %v1063, 0
    %1067 = vmatprep.subr.bf16.mxu0 0
    %1068 = vmatpush1.bf16.msra.mxu0 %v753
    %1069 = vmatprep.subr.bf16.mxu0 0
    %1070 = vmatpush1.bf16.msra.mxu0 %v754
    %1071 = vmatprep.subr.bf16.mxu0 0
    %1072 = vmatpush1.bf16.msra.mxu0 0
    %1073 = vmatprep.subr.bf16.mxu0 0
    %1074 = vmatpush1.bf16.msra.mxu0 0
    %1075 = vmatprep.subr.bf16.mxu0 0
    %1076 = vmatpush1.bf16.msra.mxu0 0
    %1077 = vmatprep.subr.bf16.mxu0 0
    %1078 = vmatpush1.bf16.msra.mxu0 0
    %1079 = vmatprep.subr.bf16.mxu0 0
    %1080 = vmatpush1.bf16.msra.mxu0 0
    %1081 = vmatprep.subr.bf16.mxu0 0
    %1082 = vmatpush1.bf16.msra.mxu0 0
    %1083 = vmatprep.subr.bf16.mxu0 0
    %1084 = vmatpush1.bf16.msra.mxu0 0
    %1085 = vmatprep.subr.bf16.mxu0 0
    %1086 = vmatpush1.bf16.msra.mxu0 0
    %1087 = vmatprep.subr.bf16.mxu0 0
    %1088 = vmatpush1.bf16.msra.mxu0 0
    %1089 = vmatprep.subr.bf16.mxu0 0
    %1090 = vmatpush1.bf16.msra.mxu0 0
    %1091 = vmatprep.subr.bf16.mxu0 0
    %1092 = vmatpush1.bf16.msra.mxu0 0
    %1093 = vmatprep.subr.bf16.mxu0 0
    %1094 = vmatpush1.bf16.msra.mxu0 0
    %1095 = vmatprep.subr.bf16.mxu0 0
    %1096 = vmatpush1.bf16.msra.mxu0 0
    %1097 = vmatprep.subr.bf16.mxu0 0
    %1098 = vmatpush1.bf16.msra.mxu0 0
    %1099 = vmatprep.mubr.bf16.mxu0 0
    %1100 = vmatmul.mubr.bf16.gmra.mrb[0].mxu0 %v1065
    %v1101 = vpop.f32.mrb[0].mxu0
    %v1102 = vadd.f32 0.0, %v1101
    %v1103 = vpop.f32.mrb[0].mxu0
    %v1104 = vpop.f32.mrb[0].mxu0
    %v1105 = vpop.f32.mrb[0].mxu0
    %1106 = vdwg.mxu0
    %v1107 = vadd.f32 %v832, %v1102
    %v1108 = vxor.u32 %v1107, 2147483648
    %v1109 = vmul.f32 %v1108, 1.442695
    %v1110 = vpow.pop %v1109
    %v1111 = vadd.f32 %v1110, 1.0
    %v1112 = vrcp.pop %v1111
    %v1113 = vmul.f32 1.0, %v1112
    %v1114 = vtanh.pop %v1107
    %v1115 = vmul.f32 %v1113, %v1053
    %1117 = vrot.lane.b32.xlu0 %v1114, 32
    %v1118 = vpop.permute.xlu0 %1117
    %v1120 = vmul.f32 %v1113, %v1118
    %1122 = vrot.lane.b32.xlu0 %v1120, 32
    %v1123 = vpop.permute.xlu0 %1122
    %v1125 = vadd.f32 %v1115, %v1123
    %v1126 = vtanh.pop %v1125
    %1128 = vrot.lane.b32.xlu0 %v1126, 32
    %v1129 = vpop.permute.xlu0 %1128
    %v1131 = vmul.f32 %v1113, %v1129
    %v1132 = vpack.c.bf16 %v1131, %v1131
    %1134 = vrot.lane.b32.xlu0 %v1132, 64
    %v1135 = vpop.permute.xlu0 %1134
    %v1137 = vsel %vm166, %v1135, 0
    %1139 = vmatprep.subr.bf16.mxu0 0
    %1140 = vmatpush1.bf16.msra.mxu0 %v753
    %1141 = vmatprep.subr.bf16.mxu0 0
    %1142 = vmatpush1.bf16.msra.mxu0 %v754
    %1143 = vmatprep.subr.bf16.mxu0 0
    %1144 = vmatpush1.bf16.msra.mxu0 0
    %1145 = vmatprep.subr.bf16.mxu0 0
    %1146 = vmatpush1.bf16.msra.mxu0 0
    %1147 = vmatprep.subr.bf16.mxu0 0
    %1148 = vmatpush1.bf16.msra.mxu0 0
    %1149 = vmatprep.subr.bf16.mxu0 0
    %1150 = vmatpush1.bf16.msra.mxu0 0
    %1151 = vmatprep.subr.bf16.mxu0 0
    %1152 = vmatpush1.bf16.msra.mxu0 0
    %1153 = vmatprep.subr.bf16.mxu0 0
    %1154 = vmatpush1.bf16.msra.mxu0 0
    %1155 = vmatprep.subr.bf16.mxu0 0
    %1156 = vmatpush1.bf16.msra.mxu0 0
    %1157 = vmatprep.subr.bf16.mxu0 0
    %1158 = vmatpush1.bf16.msra.mxu0 0
    %1159 = vmatprep.subr.bf16.mxu0 0
    %1160 = vmatpush1.bf16.msra.mxu0 0
    %1161 = vmatprep.subr.bf16.mxu0 0
    %1162 = vmatpush1.bf16.msra.mxu0 0
    %1163 = vmatprep.subr.bf16.mxu0 0
    %1164 = vmatpush1.bf16.msra.mxu0 0
    %1165 = vmatprep.subr.bf16.mxu0 0
    %1166 = vmatpush1.bf16.msra.mxu0 0
    %1167 = vmatprep.subr.bf16.mxu0 0
    %1168 = vmatpush1.bf16.msra.mxu0 0
    %1169 = vmatprep.subr.bf16.mxu0 0
    %1170 = vmatpush1.bf16.msra.mxu0 0
    %1171 = vmatprep.mubr.bf16.mxu0 0
    %1172 = vmatmul.mubr.bf16.gmra.mrb[0].mxu0 %v1137
    %v1173 = vpop.f32.mrb[0].mxu0
    %v1174 = vadd.f32 0.0, %v1173
    %v1175 = vpop.f32.mrb[0].mxu0
    %v1176 = vpop.f32.mrb[0].mxu0
    %v1177 = vpop.f32.mrb[0].mxu0
    %1178 = vdwg.mxu0
    %v1179 = vadd.f32 %v837, %v1174
    %v1180 = vxor.u32 %v1179, 2147483648
    %v1181 = vmul.f32 %v1180, 1.442695
    %v1182 = vpow.pop %v1181
    %v1183 = vadd.f32 %v1182, 1.0
    %v1184 = vrcp.pop %v1183
    %v1185 = vmul.f32 1.0, %v1184
    %v1186 = vtanh.pop %v1179
    %v1187 = vmul.f32 %v1185, %v1125
    %1189 = vrot.lane.b32.xlu0 %v1186, 32
    %v1190 = vpop.permute.xlu0 %1189
    %v1192 = vmul.f32 %v1185, %v1190
    %1194 = vrot.lane.b32.xlu0 %v1192, 32
    %v1195 = vpop.permute.xlu0 %1194
    %v1197 = vadd.f32 %v1187, %v1195
    %v1198 = vtanh.pop %v1197
    %1200 = vrot.lane.b32.xlu0 %v1198, 32
    %v1201 = vpop.permute.xlu0 %1200
    %v1203 = vmul.f32 %v1185, %v1201
    %v1204 = vpack.c.bf16 %v1203, %v1203
    %1206 = vrot.lane.b32.xlu0 %v1204, 64
    %v1207 = vpop.permute.xlu0 %1206
    %v1209 = vsel %vm166, %v1207, 0
    %1211 = vmatprep.subr.bf16.mxu0 0
    %1212 = vmatpush1.bf16.msra.mxu0 %v753
    %1213 = vmatprep.subr.bf16.mxu0 0
    %1214 = vmatpush1.bf16.msra.mxu0 %v754
    %1215 = vmatprep.subr.bf16.mxu0 0
    %1216 = vmatpush1.bf16.msra.mxu0 0
    %1217 = vmatprep.subr.bf16.mxu0 0
    %1218 = vmatpush1.bf16.msra.mxu0 0
    %1219 = vmatprep.subr.bf16.mxu0 0
    %1220 = vmatpush1.bf16.msra.mxu0 0
    %1221 = vmatprep.subr.bf16.mxu0 0
    %1222 = vmatpush1.bf16.msra.mxu0 0
    %1223 = vmatprep.subr.bf16.mxu0 0
    %1224 = vmatpush1.bf16.msra.mxu0 0
    %1225 = vmatprep.subr.bf16.mxu0 0
    %1226 = vmatpush1.bf16.msra.mxu0 0
    %1227 = vmatprep.subr.bf16.mxu0 0
    %1228 = vmatpush1.bf16.msra.mxu0 0
    %1229 = vmatprep.subr.bf16.mxu0 0
    %1230 = vmatpush1.bf16.msra.mxu0 0
    %1231 = vmatprep.subr.bf16.mxu0 0
    %1232 = vmatpush1.bf16.msra.mxu0 0
    %1233 = vmatprep.subr.bf16.mxu0 0
    %1234 = vmatpush1.bf16.msra.mxu0 0
    %1235 = vmatprep.subr.bf16.mxu0 0
    %1236 = vmatpush1.bf16.msra.mxu0 0
    %1237 = vmatprep.subr.bf16.mxu0 0
    %1238 = vmatpush1.bf16.msra.mxu0 0
    %1239 = vmatprep.subr.bf16.mxu0 0
    %1240 = vmatpush1.bf16.msra.mxu0 0
    %1241 = vmatprep.subr.bf16.mxu0 0
    %1242 = vmatpush1.bf16.msra.mxu0 0
    %1243 = vmatprep.mubr.bf16.mxu0 0
    %1244 = vmatmul.mubr.bf16.gmra.mrb[0].mxu0 %v1209
    %v1245 = vpop.f32.mrb[0].mxu0
    %v1246 = vadd.f32 0.0, %v1245
    %v1247 = vpop.f32.mrb[0].mxu0
    %v1248 = vpop.f32.mrb[0].mxu0
    %v1249 = vpop.f32.mrb[0].mxu0
    %1250 = vdwg.mxu0
    %v1251 = vadd.f32 %v840, %v1246
    %v1252 = vxor.u32 %v1251, 2147483648
    %v1253 = vmul.f32 %v1252, 1.442695
    %v1254 = vpow.pop %v1253
    %v1255 = vadd.f32 %v1254, 1.0
    %v1256 = vrcp.pop %v1255
    %v1257 = vmul.f32 1.0, %v1256
    %v1258 = vtanh.pop %v1251
    %v1259 = vmul.f32 %v1257, %v1197
    %1261 = vrot.lane.b32.xlu0 %v1258, 32
    %v1262 = vpop.permute.xlu0 %1261
    %v1264 = vmul.f32 %v1257, %v1262
    %1266 = vrot.lane.b32.xlu0 %v1264, 32
    %v1267 = vpop.permute.xlu0 %1266
    %v1269 = vadd.f32 %v1259, %v1267
    %v1270 = vtanh.pop %v1269
    %1272 = vrot.lane.b32.xlu0 %v1270, 32
    %v1273 = vpop.permute.xlu0 %1272
    %v1275 = vmul.f32 %v1257, %v1273
    %v1276 = vpack.c.bf16 %v1275, %v1275
    %1278 = vrot.lane.b32.xlu0 %v1276, 64
    %v1279 = vpop.permute.xlu0 %1278
    %v1281 = vsel %vm166, %v1279, 0
    %1283 = vmatprep.subr.bf16.mxu0 0
    %1284 = vmatpush1.bf16.msra.mxu0 %v753
    %1285 = vmatprep.subr.bf16.mxu0 0
    %1286 = vmatpush1.bf16.msra.mxu0 %v754
    %1287 = vmatprep.subr.bf16.mxu0 0
    %1288 = vmatpush1.bf16.msra.mxu0 0
    %1289 = vmatprep.subr.bf16.mxu0 0
    %1290 = vmatpush1.bf16.msra.mxu0 0
    %1291 = vmatprep.subr.bf16.mxu0 0
    %1292 = vmatpush1.bf16.msra.mxu0 0
    %1293 = vmatprep.subr.bf16.mxu0 0
    %1294 = vmatpush1.bf16.msra.mxu0 0
    %1295 = vmatprep.subr.bf16.mxu0 0
    %1296 = vmatpush1.bf16.msra.mxu0 0
    %1297 = vmatprep.subr.bf16.mxu0 0
    %1298 = vmatpush1.bf16.msra.mxu0 0
    %1299 = vmatprep.subr.bf16.mxu0 0
    %1300 = vmatpush1.bf16.msra.mxu0 0
    %1301 = vmatprep.subr.bf16.mxu0 0
    %1302 = vmatpush1.bf16.msra.mxu0 0
    %1303 = vmatprep.subr.bf16.mxu0 0
    %1304 = vmatpush1.bf16.msra.mxu0 0
    %1305 = vmatprep.subr.bf16.mxu0 0
    %1306 = vmatpush1.bf16.msra.mxu0 0
    %1307 = vmatprep.subr.bf16.mxu0 0
    %1308 = vmatpush1.bf16.msra.mxu0 0
    %1309 = vmatprep.subr.bf16.mxu0 0
    %1310 = vmatpush1.bf16.msra.mxu0 0
    %1311 = vmatprep.subr.bf16.mxu0 0
    %1312 = vmatpush1.bf16.msra.mxu0 0
    %1313 = vmatprep.subr.bf16.mxu0 0
    %1314 = vmatpush1.bf16.msra.mxu0 0
    %1315 = vmatprep.mubr.bf16.mxu0 0
    %1316 = vmatmul.mubr.bf16.gmra.mrb[0].mxu0 %v1281
    %v1317 = vpop.f32.mrb[0].mxu0
    %v1318 = vadd.f32 0.0, %v1317
    %v1319 = vpop.f32.mrb[0].mxu0
    %v1320 = vpop.f32.mrb[0].mxu0
    %v1321 = vpop.f32.mrb[0].mxu0
    %1322 = vdwg.mxu0
    %v1323 = vadd.f32 %v845, %v1318
    %v1324 = vxor.u32 %v1323, 2147483648
    %v1325 = vmul.f32 %v1324, 1.442695
    %v1326 = vpow.pop %v1325
    %v1327 = vadd.f32 %v1326, 1.0
    %v1328 = vrcp.pop %v1327
    %v1329 = vmul.f32 1.0, %v1328
    %v1330 = vtanh.pop %v1323
    %v1331 = vmul.f32 %v1329, %v1269
    %1333 = vrot.lane.b32.xlu0 %v1330, 32
    %v1334 = vpop.permute.xlu0 %1333
    %v1336 = vmul.f32 %v1329, %v1334
    %1338 = vrot.lane.b32.xlu0 %v1336, 32
    %v1339 = vpop.permute.xlu0 %1338
    %v1341 = vadd.f32 %v1331, %v1339
    %v1342 = vtanh.pop %v1341
    %1344 = vrot.lane.b32.xlu0 %v1342, 32
    %v1345 = vpop.permute.xlu0 %1344
    %v1347 = vmul.f32 %v1329, %v1345
    %v1348 = vpack.c.bf16 %v1347, %v1347
    %1350 = vrot.lane.b32.xlu0 %v1348, 64
    %v1351 = vpop.permute.xlu0 %1350
    %v1353 = vsel %vm166, %v1351, 0
    %1355 = vmatprep.subr.bf16.mxu0 0
    %1356 = vmatpush1.bf16.msra.mxu0 %v753
    %1357 = vmatprep.subr.bf16.mxu0 0
    %1358 = vmatpush1.bf16.msra.mxu0 %v754
    %1359 = vmatprep.subr.bf16.mxu0 0
    %1360 = vmatpush1.bf16.msra.mxu0 0
    %1361 = vmatprep.subr.bf16.mxu0 0
    %1362 = vmatpush1.bf16.msra.mxu0 0
    %1363 = vmatprep.subr.bf16.mxu0 0
    %1364 = vmatpush1.bf16.msra.mxu0 0
    %1365 = vmatprep.subr.bf16.mxu0 0
    %1366 = vmatpush1.bf16.msra.mxu0 0
    %1367 = vmatprep.subr.bf16.mxu0 0
    %1368 = vmatpush1.bf16.msra.mxu0 0
    %1369 = vmatprep.subr.bf16.mxu0 0
    %1370 = vmatpush1.bf16.msra.mxu0 0
    %1371 = vmatprep.subr.bf16.mxu0 0
    %1372 = vmatpush1.bf16.msra.mxu0 0
    %1373 = vmatprep.subr.bf16.mxu0 0
    %1374 = vmatpush1.bf16.msra.mxu0 0
    %1375 = vmatprep.subr.bf16.mxu0 0
    %1376 = vmatpush1.bf16.msra.mxu0 0
    %1377 = vmatprep.subr.bf16.mxu0 0
    %1378 = vmatpush1.bf16.msra.mxu0 0
    %1379 = vmatprep.subr.bf16.mxu0 0
    %1380 = vmatpush1.bf16.msra.mxu0 0
    %1381 = vmatprep.subr.bf16.mxu0 0
    %1382 = vmatpush1.bf16.msra.mxu0 0
    %1383 = vmatprep.subr.bf16.mxu0 0
    %1384 = vmatpush1.bf16.msra.mxu0 0
    %1385 = vmatprep.subr.bf16.mxu0 0
    %1386 = vmatpush1.bf16.msra.mxu0 0
    %1387 = vmatprep.mubr.bf16.mxu0 0
    %1388 = vmatmul.mubr.bf16.gmra.mrb[0].mxu0 %v1353
    %v1389 = vpop.f32.mrb[0].mxu0
    %v1390 = vadd.f32 0.0, %v1389
    %v1391 = vpop.f32.mrb[0].mxu0
    %v1392 = vpop.f32.mrb[0].mxu0
    %v1393 = vpop.f32.mrb[0].mxu0
    %1394 = vdwg.mxu0
    %v1395 = vadd.f32 %v848, %v1390
    %v1396 = vxor.u32 %v1395, 2147483648
    %v1397 = vmul.f32 %v1396, 1.442695
    %v1398 = vpow.pop %v1397
    %v1399 = vadd.f32 %v1398, 1.0
    %v1400 = vrcp.pop %v1399
    %v1401 = vmul.f32 1.0, %v1400
    %v1402 = vtanh.pop %v1395
    %v1403 = vmul.f32 %v1401, %v1341
    %1405 = vrot.lane.b32.xlu0 %v1402, 32
    %v1406 = vpop.permute.xlu0 %1405
    %v1408 = vmul.f32 %v1401, %v1406
    %1410 = vrot.lane.b32.xlu0 %v1408, 32
    %v1411 = vpop.permute.xlu0 %1410
    %v1413 = vadd.f32 %v1403, %v1411
    %v1414 = vtanh.pop %v1413
    %1416 = vrot.lane.b32.xlu0 %v1414, 32
    %v1417 = vpop.permute.xlu0 %1416
    %v1419 = vmul.f32 %v1401, %v1417
    %v1420 = vpack.c.bf16 %v1419, %v1419
    %v1421 = vld [vmem:[%s7] sm:$0xff]
    %v1422 = vld [vmem:[%s7 + $0x8] sm:$0xff]
    %v1423 = vld [vmem:[%s7 + $0x10] sm:$0xff]
    %v1424 = vld [vmem:[%s7 + $0x18] sm:$0xff]
    %v1425 = vpack.c.bf16 %v1422, %v1421
    %v1426 = vpack.c.bf16 %v1424, %v1423
    %v1427 = vld [vmem:[%s8] sm:$0x1]
    %v1429 = vlaneseq
    %v1430 = vshrl.u32 %v1429, 7
    %v1431 = vsub.s32 0, %v1430
    %v1432 = vrot.slane %v1427, %v1431
    %1435 = vrot.lane.b32.xlu0 %v1420, 64
    %v1436 = vpop.permute.xlu0 %1435
    %v1438 = vsel %vm166, %v1436, 0
    %1440 = vmatprep.subr.bf16.mxu0 0
    %1441 = vmatpush1.bf16.msra.mxu0 %v1425
    %1442 = vmatprep.subr.bf16.mxu0 0
    %1443 = vmatpush1.bf16.msra.mxu0 %v1426
    %1444 = vmatprep.subr.bf16.mxu0 0
    %1445 = vmatpush1.bf16.msra.mxu0 0
    %1446 = vmatprep.subr.bf16.mxu0 0
    %1447 = vmatpush1.bf16.msra.mxu0 0
    %1448 = vmatprep.subr.bf16.mxu0 0
    %1449 = vmatpush1.bf16.msra.mxu0 0
    %1450 = vmatprep.subr.bf16.mxu0 0
    %1451 = vmatpush1.bf16.msra.mxu0 0
    %1452 = vmatprep.subr.bf16.mxu0 0
    %1453 = vmatpush1.bf16.msra.mxu0 0
    %1454 = vmatprep.subr.bf16.mxu0 0
    %1455 = vmatpush1.bf16.msra.mxu0 0
    %1456 = vmatprep.subr.bf16.mxu0 0
    %1457 = vmatpush1.bf16.msra.mxu0 0
    %1458 = vmatprep.subr.bf16.mxu0 0
    %1459 = vmatpush1.bf16.msra.mxu0 0
    %1460 = vmatprep.subr.bf16.mxu0 0
    %1461 = vmatpush1.bf16.msra.mxu0 0
    %1462 = vmatprep.subr.bf16.mxu0 0
    %1463 = vmatpush1.bf16.msra.mxu0 0
    %1464 = vmatprep.subr.bf16.mxu0 0
    %1465 = vmatpush1.bf16.msra.mxu0 0
    %1466 = vmatprep.subr.bf16.mxu0 0
    %1467 = vmatpush1.bf16.msra.mxu0 0
    %1468 = vmatprep.subr.bf16.mxu0 0
    %1469 = vmatpush1.bf16.msra.mxu0 0
    %1470 = vmatprep.subr.bf16.mxu0 0
    %1471 = vmatpush1.bf16.msra.mxu0 0
    %1472 = vmatprep.mubr.bf16.mxu0 0
    %1473 = vmatmul.mubr.bf16.gmra.mrb[0].mxu0 %v1438
    %v1474 = vpop.f32.mrb[0].mxu0
    %v1475 = vadd.f32 %v1432, %v1474
    %v1476 = vpop.f32.mrb[0].mxu0
    %v1477 = vpop.f32.mrb[0].mxu0
    %v1478 = vpop.f32.mrb[0].mxu0
    %1479 = vdwg.mxu0
    %v1480 = vmax.f32 %v1475, 0.0
    %v1481 = vpack.c.bf16 %v1480, %v1480
    %v1482 = vld [vmem:[%s9] sm:$0xff]
    %v1483 = vld [vmem:[%s9 + $0x8] sm:$0xff]
    %v1484 = vld [vmem:[%s9 + $0x10] sm:$0xff]
    %v1485 = vld [vmem:[%s9 + $0x18] sm:$0xff]
    %v1486 = vpack.c.bf16 %v1483, %v1482
    %v1487 = vpack.c.bf16 %v1485, %v1484
    %v1488 = vld [vmem:[%s10] sm:$0x1]
    %v1490 = vlaneseq
    %v1491 = vshrl.u32 %v1490, 7
    %v1492 = vsub.s32 0, %v1491
    %v1493 = vrot.slane %v1488, %v1492
    %v1496 = vsel %vm166, %v1481, 0
    %1498 = vmatprep.subr.bf16.mxu0 0
    %1499 = vmatpush1.bf16.msra.mxu0 %v1486
    %1500 = vmatprep.subr.bf16.mxu0 0
    %1501 = vmatpush1.bf16.msra.mxu0 %v1487
    %1502 = vmatprep.subr.bf16.mxu0 0
    %1503 = vmatpush1.bf16.msra.mxu0 0
    %1504 = vmatprep.subr.bf16.mxu0 0
    %1505 = vmatpush1.bf16.msra.mxu0 0
    %1506 = vmatprep.subr.bf16.mxu0 0
    %1507 = vmatpush1.bf16.msra.mxu0 0
    %1508 = vmatprep.subr.bf16.mxu0 0
    %1509 = vmatpush1.bf16.msra.mxu0 0
    %1510 = vmatprep.subr.bf16.mxu0 0
    %1511 = vmatpush1.bf16.msra.mxu0 0
    %1512 = vmatprep.subr.bf16.mxu0 0
    %1513 = vmatpush1.bf16.msra.mxu0 0
    %1514 = vmatprep.subr.bf16.mxu0 0
    %1515 = vmatpush1.bf16.msra.mxu0 0
    %1516 = vmatprep.subr.bf16.mxu0 0
    %1517 = vmatpush1.bf16.msra.mxu0 0
    %1518 = vmatprep.subr.bf16.mxu0 0
    %1519 = vmatpush1.bf16.msra.mxu0 0
    %1520 = vmatprep.subr.bf16.mxu0 0
    %1521 = vmatpush1.bf16.msra.mxu0 0
    %1522 = vmatprep.subr.bf16.mxu0 0
    %1523 = vmatpush1.bf16.msra.mxu0 0
    %1524 = vmatprep.subr.bf16.mxu0 0
    %1525 = vmatpush1.bf16.msra.mxu0 0
    %1526 = vmatprep.subr.bf16.mxu0 0
    %1527 = vmatpush1.bf16.msra.mxu0 0
    %1528 = vmatprep.subr.bf16.mxu0 0
    %1529 = vmatpush1.bf16.msra.mxu0 0
    %1530 = vmatprep.mubr.bf16.mxu0 0
    %1531 = vmatmul.mubr.bf16.gmra.mrb[0].mxu0 %v1496
    %v1532 = vpop.f32.mrb[0].mxu0
    %v1533 = vadd.f32 %v1493, %v1532
    %v1534 = vpop.f32.mrb[0].mxu0
    %v1535 = vpop.f32.mrb[0].mxu0
    %v1536 = vpop.f32.mrb[0].mxu0
    %1537 = vdwg.mxu0
    %v1538 = vmax.f32 %v1533, 0.0
    %v1539 = vpack.c.bf16 %v1538, %v1538
    %v1540 = vld [vmem:[%s11] sm:$0xff]
    %v1541 = vld [vmem:[%s11 + $0x8] sm:$0xff]
    %v1542 = vpack.c.bf16 %v1541, %v1540
    %v1543 = vld [vmem:[%s12] sm:$0x1]
    %v1545 = vlaneseq
    %v1546 = vshrl.u32 %v1545, 7
    %v1547 = vsub.s32 0, %v1546
    %v1548 = vrot.slane %v1543, %v1547
    %vm1550 = vcmask 130048
    %v1552 = vsel %vm1550, %v1539, 0
    %1554 = vmatprep.subr.bf16.mxu0 0
    %1555 = vmatpush1.bf16.msra.mxu0 %v1542
    %1556 = vmatprep.subr.bf16.mxu0 0
    %1557 = vmatpush1.bf16.msra.mxu0 0
    %1558 = vmatprep.subr.bf16.mxu0 0
    %1559 = vmatpush1.bf16.msra.mxu0 0
    %1560 = vmatprep.subr.bf16.mxu0 0
    %1561 = vmatpush1.bf16.msra.mxu0 0
    %1562 = vmatprep.subr.bf16.mxu0 0
    %1563 = vmatpush1.bf16.msra.mxu0 0
    %1564 = vmatprep.subr.bf16.mxu0 0
    %1565 = vmatpush1.bf16.msra.mxu0 0
    %1566 = vmatprep.subr.bf16.mxu0 0
    %1567 = vmatpush1.bf16.msra.mxu0 0
    %1568 = vmatprep.subr.bf16.mxu0 0
    %1569 = vmatpush1.bf16.msra.mxu0 0
    %1570 = vmatprep.subr.bf16.mxu0 0
    %1571 = vmatpush1.bf16.msra.mxu0 0
    %1572 = vmatprep.subr.bf16.mxu0 0
    %1573 = vmatpush1.bf16.msra.mxu0 0
    %1574 = vmatprep.subr.bf16.mxu0 0
    %1575 = vmatpush1.bf16.msra.mxu0 0
    %1576 = vmatprep.subr.bf16.mxu0 0
    %1577 = vmatpush1.bf16.msra.mxu0 0
    %1578 = vmatprep.subr.bf16.mxu0 0
    %1579 = vmatpush1.bf16.msra.mxu0 0
    %1580 = vmatprep.subr.bf16.mxu0 0
    %1581 = vmatpush1.bf16.msra.mxu0 0
    %1582 = vmatprep.subr.bf16.mxu0 0
    %1583 = vmatpush1.bf16.msra.mxu0 0
    %1584 = vmatprep.subr.bf16.mxu0 0
    %1585 = vmatpush1.bf16.msra.mxu0 0
    %1586 = vmatprep.mubr.bf16.mxu0 0
    %1587 = vmatmul.mubr.bf16.gmra.mrb[0].mxu0 %v1552
    %v1588 = vpop.f32.mrb[0].mxu0
    %v1589 = vadd.f32 %v1548, %v1588
    %v1590 = vpop.f32.mrb[0].mxu0
    %v1591 = vpop.f32.mrb[0].mxu0
    %v1592 = vpop.f32.mrb[0].mxu0
    %1593 = vdwg.mxu0
    %1594 = vst.msk [vmem:[%s13] sm:$0xff] %vm84, %v1589
    // Predicated region
    $region58: #{tpu_custom_call.1} parent=1 // pred_check
      _
    $region59: #{tpu_custom_call.1} parent=1 // pred_check_branch
      %1596 = sbr.rel (0) target = $region61
    $region60: #{tpu_custom_call.1} parent=1 // pred_region
      _
    $region61: #{tpu_custom_call.1} parent=1 // pred_fallthru
      _
    // Predicated region
    $region62: #{tpu_custom_call.1} parent=1 // pred_check
      _
    $region63: #{tpu_custom_call.1} parent=1 // pred_check_branch
      %1598 = sbr.rel (0) target = $region65
    $region64: #{tpu_custom_call.1} parent=1 // pred_region
      _
    $region65: #{tpu_custom_call.1} parent=1 // pred_fallthru
      _
    %1599 = vsyncpa [#allocation3], 1

</llo_original>
